<compile_context>
chip_gen: v7x
topology: tpu7x:2x2x1
jax: 0.10.0
libtpu: 0.0.40
codegen_flags: <defaults>
</compile_context>

<pallas_src>
import functools

import jax
import jax.numpy as jnp
import numpy as np
from jax import lax
from jax.experimental import pallas as pl
from jax.experimental.pallas import tpu as pltpu

_MXU_DTYPE = jnp.bfloat16   # MXU operand dtype for the conv GEMMs
_EPS = 1e-5                 # BatchNorm eps


# ------------------------------ Pallas kernel ------------------------------ #

def _hourglass_kernel(x_ref, em1_ref, em2_ref,
                      w1_ref, w2_ref, w3_ref, w4_ref, w5_ref, w6_ref,
                      r1_ref, r2_ref, r2c_ref, r3_ref, r4_ref, r4c_ref,
                      r5_ref, r6_ref,
                      out_ref, xmid_ref, xprime_ref,
                      *, geo, mxu_dtype):
    """Whole hourglass_2 forward for one image; activations never leave VMEM.

    Activations are (channels, padded-flat-spatial) matrices (channels on
    sublanes, flattened spatial on lanes).  wpX = padded row stride, mX = the
    length of the stride-1 "slide" window at that resolution.
    """
    (wp0, m0), (wp1, m1), (wp2, m2) = geo
    f32 = jnp.float32

    def taps3x3(a, wp, m):
        # K-concat of the 9 shifted views of the padded-flat activation.
        return jnp.concatenate(
            [a[:, dy * wp + dx: dy * wp + dx + m]
             for dy in range(3) for dx in range(3)], axis=0)

    def taps2x2(a, wp, m):
        # K-concat of the 4 (dy, dx) in {0,1}^2 views used by the deconv phases.
        base = wp + 1
        return jnp.concatenate(
            [a[:, base + dy * wp + dx: base + dy * wp + dx + m]
             for dy in (0, 1) for dx in (0, 1)], axis=0)

    def mm(a, b):
        return jnp.dot(a, b, preferred_element_type=f32)

    relu = lambda t: jnp.maximum(t, 0.0)

    # ---- conv1: 3x3 s2 + BN + ReLU  (full res -> half res) ----
    y = mm(w1_ref[...], taps3x3(x_ref[...], wp0, m0))             # (C1, m0)
    a1 = relu(mm(y, r1_ref[...]))                                 # (C1, Mpad1)

    # ---- conv2: 3x3 s1, + em1, ReLU  (half res) ----
    y = mm(w2_ref[...], taps3x3(a1.astype(mxu_dtype), wp1, m1))   # (C1, m1)
    z = relu(y + em1_ref[:, wp1 + 1: wp1 + 1 + m1])
    xmid_ref[...] = mm(z, r2c_ref[...])                           # (C1, Hh*Wh)
    a2 = mm(z, r2_ref[...])                                       # (C1, Mpad1)

    # ---- conv3: 3x3 s2 + BN + ReLU  (half res -> quarter res) ----
    y = mm(w3_ref[...], taps3x3(a2.astype(mxu_dtype), wp1, m1))
    a3 = relu(mm(y, r3_ref[...]))                                 # (C1, Mpad2)

    # ---- conv4: 3x3 s1, + em2, ReLU  (quarter res, C1 -> C2) ----
    y = mm(w4_ref[...], taps3x3(a3.astype(mxu_dtype), wp2, m2))   # (C2, m2)
    z = relu(y + em2_ref[:, wp2 + 1: wp2 + 1 + m2])
    xprime_ref[...] = mm(z, r4c_ref[...])                         # (C2, Hq*Wq)
    a4 = mm(z, r4_ref[...])                                       # (C2, Mpad2)

    # ---- conv5: 3x3 convT s2 (phases folded into Cout) + BN + ReLU ----
    c1 = w5_ref.shape[0] // 4
    y = mm(w5_ref[...], taps2x2(a4.astype(mxu_dtype), wp2, m2))   # (4*C1, m2)
    yr = jnp.concatenate([y[p * c1:(p + 1) * c1, :] for p in range(4)], axis=1)
    a5 = relu(mm(yr, r5_ref[...]))                                # (C1, Mpad1)

    # ---- conv6: 3x3 convT s2 (phases folded into Cout) + BN (no ReLU) ----
    c0 = w6_ref.shape[0] // 4
    y = mm(w6_ref[...], taps2x2(a5.astype(mxu_dtype), wp1, m1))   # (4*C0, m1)
    yr = jnp.concatenate([y[p * c0:(p + 1) * c0, :] for p in range(4)], axis=1)
    out_ref[...] = mm(yr, r6_ref[...])                            # (C0, H*W)


# ------------------------- weight / constant packing ------------------------ #

def _bn_scale(c):
    # Inference BN with default stats == per-channel scale 1/sqrt(1+eps).
    return jnp.full((c,), 1.0 / np.sqrt(1.0 + _EPS), jnp.float32)


def _pack_conv3x3(w_oihw, scale):
    """(Cout,Cin,3,3) -> (Cout, 9*Cin) with taps along K, BN scale folded."""
    w = jnp.concatenate([w_oihw[:, :, a, b]
                         for a in range(3) for b in range(3)], axis=1)
    if scale is not None:
        w = w * scale[:, None]
    return w.astype(_MXU_DTYPE)


def _pack_convT3x3_s2(w_iohw, scale):
    """(Cin,Cout,3,3) ConvTranspose(s=2,p=1,op=1) -> (4*Cout, 4*Cin).

    Rows grouped by output phase p = pi*2+pj, columns by tap (dy,dx) in
    {0,1}^2 (missing phase taps are zero blocks)."""
    cin, cout = w_iohw.shape[0], w_iohw.shape[1]
    rows = []
    for pi in (0, 1):
        for pj in (0, 1):
            blks = []
            for da in (0, 1):
                for db in (0, 1):
                    a, b = pi + 1 - 2 * da, pj + 1 - 2 * db
                    if 0 <= a <= 2 and 0 <= b <= 2:
                        blks.append(jnp.transpose(w_iohw[:, :, a, b]))
                    else:
                        blks.append(jnp.zeros((cout, cin), w_iohw.dtype))
            rows.append(jnp.concatenate(blks, axis=1))
    w = jnp.concatenate(rows, axis=0)                      # (4*Cout, 4*Cin)
    if scale is not None:
        w = w * jnp.tile(scale, 4)[:, None]
    return w.astype(_MXU_DTYPE)


# Constant 0/1 layout matrices (built with numpy at trace time -> constants).

def _r_stride2(h, w):
    """Stride-1 slide over the (h,w) grid -> padded-flat of the (h/2,w/2) grid."""
    wp_i, ho, wo = w + 2, h // 2, w // 2
    wp_o = wo + 2
    m = (h - 1) * wp_i + w
    r = np.zeros((m, (ho + 2) * wp_o), np.float32)
    for i in range(ho):
        for j in range(wo):
            r[(2 * i) * wp_i + 2 * j, (i + 1) * wp_o + (j + 1)] = 1.0
    return jnp.asarray(r)


def _r_repad(h, w):
    """Slide layout -> same-level padded-flat layout (drops junk, adds ring)."""
    wp = w + 2
    m = (h - 1) * wp + w
    r = np.zeros((m, (h + 2) * wp), np.float32)
    for i in range(h):
        for j in range(w):
            r[i * wp + j, (i + 1) * wp + (j + 1)] = 1.0
    return jnp.asarray(r)


def _r_compact(h, w):
    """Slide layout -> dense (h*w) layout (for the HBM outputs)."""
    wp = w + 2
    m = (h - 1) * wp + w
    r = np.zeros((m, h * w), np.float32)
    for i in range(h):
        for j in range(w):
            r[i * wp + j, i * w + j] = 1.0
    return jnp.asarray(r)


def _r_phase_scatter(h, w, compact):
    """Phase-major deconv result (4 blocks of the (h,w) slide) -> 2h x 2w grid.

    compact=False: padded-flat layout of the 2x resolution (feeds next layer);
    compact=True : dense (2h*2w) layout (final output)."""
    wp = w + 2
    m = (h - 1) * wp + w
    ho, wo = 2 * h, 2 * w
    ncol = ho * wo if compact else (ho + 2) * (wo + 2)
    r = np.zeros((4 * m, ncol), np.float32)
    for pi in (0, 1):
        for pj in (0, 1):
            p = pi * 2 + pj
            for mm_ in range(h):
                for n in range(w):
                    oi, oj = 2 * mm_ + pi, 2 * n + pj
                    col = oi * wo + oj if compact else (oi + 1) * (wo + 2) + (oj + 1)
                    r[p * m + mm_ * wp + n, col] = 1.0
    return jnp.asarray(r)


# ---------------------------- hourglass_2 forward --------------------------- #

def init_params(channels_in, key):
    C = channels_in
    ks = jax.random.split(key, 6)

    def w(k, shape):
        return (0.05 * jax.random.normal(k, shape)).astype(jnp.float32)

    return {
        "w1": w(ks[0], (2 * C, C, 3, 3)),        # Conv2d OIHW
        "w2": w(ks[1], (2 * C, 2 * C, 3, 3)),
        "w3": w(ks[2], (2 * C, 2 * C, 3, 3)),
        "w4": w(ks[3], (4 * C, 2 * C, 3, 3)),
        "wt5": w(ks[4], (4 * C, 2 * C, 3, 3)),   # ConvTranspose2d (in,out,kh,kw)
        "wt6": w(ks[5], (2 * C, C, 3, 3)),
    }


def hourglass_2_forward(params, x, em1, em2):
    """x, em1, em2 in NCHW float32; returns (out, x, x_prime) in NCHW."""
    B, C0, H, W = x.shape
    assert H % 4 == 0 and W % 4 == 0, "hourglass_2 needs H, W divisible by 4"
    C1, C2 = 2 * C0, 4 * C0
    Hh, Wh = H // 2, W // 2
    Hq, Wq = H // 4, W // 4

    # padded-flat geometry per resolution level
    wp0, mpad0, m0 = W + 2, (H + 2) * (W + 2), (H - 1) * (W + 2) + W
    wp1, mpad1, m1 = Wh + 2, (Hh + 2) * (Wh + 2), (Hh - 1) * (Wh + 2) + Wh
    wp2, mpad2, m2 = Wq + 2, (Hq + 2) * (Wq + 2), (Hq - 1) * (Wq + 2) + Wq

    # packed weights (taps along K, BN scale folded, bf16)
    wp_1 = _pack_conv3x3(params["w1"], _bn_scale(C1))
    wp_2 = _pack_conv3x3(params["w2"], None)
    wp_3 = _pack_conv3x3(params["w3"], _bn_scale(C1))
    wp_4 = _pack_conv3x3(params["w4"], None)
    wp_5 = _pack_convT3x3_s2(params["wt5"], _bn_scale(C1))
    wp_6 = _pack_convT3x3_s2(params["wt6"], _bn_scale(C0))

    # constant layout matrices
    r1 = _r_stride2(H, W)                      # (m0, mpad1)
    r2 = _r_repad(Hh, Wh)                      # (m1, mpad1)
    r2c = _r_compact(Hh, Wh)                   # (m1, Hh*Wh)
    r3 = _r_stride2(Hh, Wh)                    # (m1, mpad2)
    r4 = _r_repad(Hq, Wq)                      # (m2, mpad2)
    r4c = _r_compact(Hq, Wq)                   # (m2, Hq*Wq)
    r5 = _r_phase_scatter(Hq, Wq, compact=False)   # (4*m2, mpad1)
    r6 = _r_phase_scatter(Hh, Wh, compact=True)    # (4*m1, H*W)

    # inputs: padded-flat layout; activations in bf16, residuals in f32
    x_pad = jnp.pad(x, ((0, 0), (0, 0), (1, 1), (1, 1))
                    ).reshape(B, C0, mpad0).astype(_MXU_DTYPE)
    em1_pad = jnp.pad(em1, ((0, 0), (0, 0), (1, 1), (1, 1))
                      ).reshape(B, C1, mpad1).astype(jnp.float32)
    em2_pad = jnp.pad(em2, ((0, 0), (0, 0), (1, 1), (1, 1))
                      ).reshape(B, C2, mpad2).astype(jnp.float32)

    consts = (wp_1, wp_2, wp_3, wp_4, wp_5, wp_6,
              r1, r2, r2c, r3, r4, r4c, r5, r6)

    def img_spec(c, m):
        return pl.BlockSpec((None, c, m), lambda b: (b, 0, 0))

    def const_spec(a):
        return pl.BlockSpec(a.shape, lambda b: (0, 0))

    in_specs = ([img_spec(C0, mpad0), img_spec(C1, mpad1), img_spec(C2, mpad2)]
                + [const_spec(a) for a in consts])

    out_shape = (jax.ShapeDtypeStruct((B, C0, H * W), jnp.float32),
                 jax.ShapeDtypeStruct((B, C1, Hh * Wh), jnp.float32),
                 jax.ShapeDtypeStruct((B, C2, Hq * Wq), jnp.float32))
    out_specs = (img_spec(C0, H * W), img_spec(C1, Hh * Wh),
                 img_spec(C2, Hq * Wq))

    gemms = [
        (C1, 9 * C0, m0), (C1, m0, mpad1),                       # conv1
        (C1, 9 * C1, m1), (C1, m1, Hh * Wh), (C1, m1, mpad1),    # conv2
        (C1, 9 * C1, m1), (C1, m1, mpad2),                       # conv3
        (C2, 9 * C1, m2), (C2, m2, Hq * Wq), (C2, m2, mpad2),    # conv4
        (4 * C1, 4 * C2, m2), (C1, 4 * m2, mpad1),               # conv5
        (4 * C0, 4 * C1, m1), (C0, 4 * m1, H * W),               # conv6
    ]
    flops = 2 * B * sum(mm_ * kk * nn for mm_, kk, nn in gemms)
    bytes_accessed = int(
        np.prod(x_pad.shape) * x_pad.dtype.itemsize
        + np.prod(em1_pad.shape) * 4 + np.prod(em2_pad.shape) * 4
        + sum(int(np.prod(a.shape)) * a.dtype.itemsize for a in consts)
        + sum(int(np.prod(s.shape)) * 4 for s in out_shape))

    kernel = functools.partial(
        _hourglass_kernel,
        geo=((wp0, m0), (wp1, m1), (wp2, m2)),
        mxu_dtype=_MXU_DTYPE)

    out_flat, xmid_flat, xprime_flat = pl.pallas_call(
        kernel,
        out_shape=out_shape,
        grid=(B,),
        in_specs=in_specs,
        out_specs=out_specs,
        compiler_params=pltpu.CompilerParams(
            dimension_semantics=("arbitrary",),
            vmem_limit_bytes=16 * 2 ** 20),
        cost_estimate=pl.CostEstimate(flops=flops, transcendentals=0,
                                      bytes_accessed=bytes_accessed),
    )(x_pad, em1_pad, em2_pad, *consts)

    return (out_flat.reshape(B, C0, H, W),
            xmid_flat.reshape(B, C1, Hh, Wh),
            xprime_flat.reshape(B, C2, Hq, Wq))


# ----------------------- pure-JAX (XLA conv) reference ---------------------- #

def _conv_ref(x, w_oihw, stride, pad):
    return lax.conv_general_dilated(
        x, w_oihw, (stride, stride), ((pad, pad), (pad, pad)),
        dimension_numbers=("NCHW", "OIHW", "NCHW"))


def _convT_ref(x, w_iohw, stride=2, pad=1, out_pad=1):
    k = w_iohw.shape[2]
    w_eq = jnp.flip(jnp.transpose(w_iohw, (1, 0, 2, 3)), axis=(2, 3))
    plo, phi = k - 1 - pad, k - 1 - pad + out_pad
    return lax.conv_general_dilated(
        x, w_eq, (1, 1), ((plo, phi), (plo, phi)), lhs_dilation=(stride, stride),
        dimension_numbers=("NCHW", "OIHW", "NCHW"))


def hourglass_2_ref(params, x, em1, em2):
    bn = lambda t: t * (1.0 / np.sqrt(1.0 + _EPS))
    y = jax.nn.relu(bn(_conv_ref(x, params["w1"], 2, 1)))
    y = jax.nn.relu(_conv_ref(y, params["w2"], 1, 1) + em1)
    z = jax.nn.relu(bn(_conv_ref(y, params["w3"], 2, 1)))
    z = jax.nn.relu(_conv_ref(z, params["w4"], 1, 1) + em2)
    o = jax.nn.relu(bn(_convT_ref(z, params["wt5"])))
    o = bn(_convT_ref(o, params["wt6"]))
    return o, y, z


# ----------------------------------- main ----------------------------------- #

if __name__ == "__main__":
    key = jax.random.PRNGKey(0)
    k_p, k_x, k_e1, k_e2 = jax.random.split(key, 4)

    C, B, H, W = 4, 2, 16, 16
    params = init_params(C, k_p)
    x = jax.random.normal(k_x, (B, C, H, W), jnp.float32)
    em1 = jax.random.normal(k_e1, (B, 2 * C, H // 2, W // 2), jnp.float32)
    em2 = jax.random.normal(k_e2, (B, 4 * C, H // 4, W // 4), jnp.float32)

    fwd = jax.jit(hourglass_2_forward)
    out, x_mid, x_prime = fwd(params, x, em1, em2)
    jax.block_until_ready((out, x_mid, x_prime))

    assert out.shape == (B, C, H, W)
    assert x_mid.shape == (B, 2 * C, H // 2, W // 2)
    assert x_prime.shape == (B, 4 * C, H // 4, W // 4)

    # Sanity-check against plain-XLA f32 convolutions.  Tolerance accounts for
    # bf16 MXU operands in the conv GEMMs (layout GEMMs are 0/1 selections).
    r_out, r_x, r_xp = jax.jit(hourglass_2_ref)(params, x, em1, em2)
    tol = dict(rtol=3e-2, atol=3e-2)
    np.testing.assert_allclose(np.asarray(out), np.asarray(r_out), **tol)
    np.testing.assert_allclose(np.asarray(x_mid), np.asarray(r_x), **tol)
    np.testing.assert_allclose(np.asarray(x_prime), np.asarray(r_xp), **tol)

    print("KERNEL_OK")
</pallas_src>

<mosaic_0001>
module attributes {stable_mosaic.version = 11 : i64} {
  func.func @_hourglass_kernel(%arg0: i32, %arg1: memref<1x4x324xbf16, #tpu.memory_space<vmem>>, %arg2: memref<1x8x100xf32, #tpu.memory_space<vmem>>, %arg3: memref<1x16x36xf32, #tpu.memory_space<vmem>>, %arg4: memref<8x36xbf16, #tpu.memory_space<vmem>>, %arg5: memref<8x72xbf16, #tpu.memory_space<vmem>>, %arg6: memref<8x72xbf16, #tpu.memory_space<vmem>>, %arg7: memref<16x72xbf16, #tpu.memory_space<vmem>>, %arg8: memref<32x64xbf16, #tpu.memory_space<vmem>>, %arg9: memref<16x32xbf16, #tpu.memory_space<vmem>>, %arg10: memref<286x100xf32, #tpu.memory_space<vmem>>, %arg11: memref<78x100xf32, #tpu.memory_space<vmem>>, %arg12: memref<78x64xf32, #tpu.memory_space<vmem>>, %arg13: memref<78x36xf32, #tpu.memory_space<vmem>>, %arg14: memref<22x36xf32, #tpu.memory_space<vmem>>, %arg15: memref<22x16xf32, #tpu.memory_space<vmem>>, %arg16: memref<88x100xf32, #tpu.memory_space<vmem>>, %arg17: memref<312x256xf32, #tpu.memory_space<vmem>>, %arg18: memref<1x4x256xf32, #tpu.memory_space<vmem>>, %arg19: memref<1x8x64xf32, #tpu.memory_space<vmem>>, %arg20: memref<1x16x16xf32, #tpu.memory_space<vmem>>) attributes {dimension_semantics = [#tpu.dimension_semantics<arbitrary>], iteration_bounds = array<i64: 2>, scalar_prefetch = 0 : i64, scratch_operands = 0 : i64, tpu.core_type = #tpu.core_type<tc>, window_params = [{transform_indices = @transform_0, window_bounds = array<i64: 1, 4, 324>}, {transform_indices = @transform_1, window_bounds = array<i64: 1, 8, 100>}, {transform_indices = @transform_2, window_bounds = array<i64: 1, 16, 36>}, {pipeline_mode = #tpu.pipeline_mode<synchronous>, transform_indices = @transform_3, window_bounds = array<i64: 8, 36>}, {pipeline_mode = #tpu.pipeline_mode<synchronous>, transform_indices = @transform_4, window_bounds = array<i64: 8, 72>}, {pipeline_mode = #tpu.pipeline_mode<synchronous>, transform_indices = @transform_5, window_bounds = array<i64: 8, 72>}, {pipeline_mode = #tpu.pipeline_mode<synchronous>, transform_indices = @transform_6, window_bounds = array<i64: 16, 72>}, {pipeline_mode = #tpu.pipeline_mode<synchronous>, transform_indices = @transform_7, window_bounds = array<i64: 32, 64>}, {pipeline_mode = #tpu.pipeline_mode<synchronous>, transform_indices = @transform_8, window_bounds = array<i64: 16, 32>}, {pipeline_mode = #tpu.pipeline_mode<synchronous>, transform_indices = @transform_9, window_bounds = array<i64: 286, 100>}, {pipeline_mode = #tpu.pipeline_mode<synchronous>, transform_indices = @transform_10, window_bounds = array<i64: 78, 100>}, {pipeline_mode = #tpu.pipeline_mode<synchronous>, transform_indices = @transform_11, window_bounds = array<i64: 78, 64>}, {pipeline_mode = #tpu.pipeline_mode<synchronous>, transform_indices = @transform_12, window_bounds = array<i64: 78, 36>}, {pipeline_mode = #tpu.pipeline_mode<synchronous>, transform_indices = @transform_13, window_bounds = array<i64: 22, 36>}, {pipeline_mode = #tpu.pipeline_mode<synchronous>, transform_indices = @transform_14, window_bounds = array<i64: 22, 16>}, {pipeline_mode = #tpu.pipeline_mode<synchronous>, transform_indices = @transform_15, window_bounds = array<i64: 88, 100>}, {pipeline_mode = #tpu.pipeline_mode<synchronous>, transform_indices = @transform_16, window_bounds = array<i64: 312, 256>}, {transform_indices = @transform_17, window_bounds = array<i64: 1, 4, 256>}, {transform_indices = @transform_18, window_bounds = array<i64: 1, 8, 64>}, {transform_indices = @transform_19, window_bounds = array<i64: 1, 16, 16>}]} {
    %c0 = arith.constant 0 : index
    %c0_0 = arith.constant 0 : index
    %0 = vector.load %arg4[%c0, %c0_0] : memref<8x36xbf16, #tpu.memory_space<vmem>>, vector<8x36xbf16>
    %c0_1 = arith.constant 0 : index
    %c0_2 = arith.constant 0 : index
    %c0_3 = arith.constant 0 : index
    %1 = vector.load %arg1[%c0_1, %c0_2, %c0_3] : memref<1x4x324xbf16, #tpu.memory_space<vmem>>, vector<1x4x324xbf16>
    %2 = vector.shape_cast %1 : vector<1x4x324xbf16> to vector<4x324xbf16>
    %3 = vector.extract_strided_slice %2 {offsets = [0, 0], sizes = [4, 286], strides = [1, 1]} : vector<4x324xbf16> to vector<4x286xbf16>
    %4 = vector.extract_strided_slice %2 {offsets = [0, 1], sizes = [4, 286], strides = [1, 1]} : vector<4x324xbf16> to vector<4x286xbf16>
    %5 = vector.extract_strided_slice %2 {offsets = [0, 2], sizes = [4, 286], strides = [1, 1]} : vector<4x324xbf16> to vector<4x286xbf16>
    %6 = vector.extract_strided_slice %2 {offsets = [0, 18], sizes = [4, 286], strides = [1, 1]} : vector<4x324xbf16> to vector<4x286xbf16>
    %7 = vector.extract_strided_slice %2 {offsets = [0, 19], sizes = [4, 286], strides = [1, 1]} : vector<4x324xbf16> to vector<4x286xbf16>
    %8 = vector.extract_strided_slice %2 {offsets = [0, 20], sizes = [4, 286], strides = [1, 1]} : vector<4x324xbf16> to vector<4x286xbf16>
    %9 = vector.extract_strided_slice %2 {offsets = [0, 36], sizes = [4, 286], strides = [1, 1]} : vector<4x324xbf16> to vector<4x286xbf16>
    %10 = vector.extract_strided_slice %2 {offsets = [0, 37], sizes = [4, 286], strides = [1, 1]} : vector<4x324xbf16> to vector<4x286xbf16>
    %11 = vector.extract_strided_slice %2 {offsets = [0, 38], sizes = [4, 286], strides = [1, 1]} : vector<4x324xbf16> to vector<4x286xbf16>
    %12 = tpu.concatenate %3, %4, %5, %6, %7, %8, %9, %10, %11 in 0 : vector<4x286xbf16>, vector<4x286xbf16>, vector<4x286xbf16>, vector<4x286xbf16>, vector<4x286xbf16>, vector<4x286xbf16>, vector<4x286xbf16>, vector<4x286xbf16>, vector<4x286xbf16> -> vector<36x286xbf16>
    %cst = arith.constant dense<0.000000e+00> : vector<8x286xf32>
    %13 = tpu.matmul %0, %12, %cst {dimension_numbers = #tpu.dot_dimension_numbers<[1], [0], [0], [1], [0, 0, 1, 1], [], []>} : vector<8x36xbf16>, vector<36x286xbf16>, vector<8x286xf32> -> vector<8x286xf32>
    %c0_4 = arith.constant 0 : index
    %c0_5 = arith.constant 0 : index
    %14 = vector.load %arg10[%c0_4, %c0_5] : memref<286x100xf32, #tpu.memory_space<vmem>>, vector<286x100xf32>
    %cst_6 = arith.constant dense<0.000000e+00> : vector<8x100xf32>
    %15 = tpu.matmul %13, %14, %cst_6 {dimension_numbers = #tpu.dot_dimension_numbers<[1], [0], [0], [1], [0, 0, 1, 1], [], []>} : vector<8x286xf32>, vector<286x100xf32>, vector<8x100xf32> -> vector<8x100xf32>
    %cst_7 = arith.constant 0.000000e+00 : f32
    %16 = vector.broadcast %cst_7 : f32 to vector<8x100xf32>
    %17 = arith.maximumf %15, %16 : vector<8x100xf32>
    %c0_8 = arith.constant 0 : index
    %c0_9 = arith.constant 0 : index
    %18 = vector.load %arg5[%c0_8, %c0_9] : memref<8x72xbf16, #tpu.memory_space<vmem>>, vector<8x72xbf16>
    %19 = arith.truncf %17 : vector<8x100xf32> to vector<8x100xbf16>
    %20 = vector.extract_strided_slice %19 {offsets = [0, 0], sizes = [8, 78], strides = [1, 1]} : vector<8x100xbf16> to vector<8x78xbf16>
    %21 = vector.extract_strided_slice %19 {offsets = [0, 1], sizes = [8, 78], strides = [1, 1]} : vector<8x100xbf16> to vector<8x78xbf16>
    %22 = vector.extract_strided_slice %19 {offsets = [0, 2], sizes = [8, 78], strides = [1, 1]} : vector<8x100xbf16> to vector<8x78xbf16>
    %23 = vector.extract_strided_slice %19 {offsets = [0, 10], sizes = [8, 78], strides = [1, 1]} : vector<8x100xbf16> to vector<8x78xbf16>
    %24 = vector.extract_strided_slice %19 {offsets = [0, 11], sizes = [8, 78], strides = [1, 1]} : vector<8x100xbf16> to vector<8x78xbf16>
    %25 = vector.extract_strided_slice %19 {offsets = [0, 12], sizes = [8, 78], strides = [1, 1]} : vector<8x100xbf16> to vector<8x78xbf16>
    %26 = vector.extract_strided_slice %19 {offsets = [0, 20], sizes = [8, 78], strides = [1, 1]} : vector<8x100xbf16> to vector<8x78xbf16>
    %27 = vector.extract_strided_slice %19 {offsets = [0, 21], sizes = [8, 78], strides = [1, 1]} : vector<8x100xbf16> to vector<8x78xbf16>
    %28 = vector.extract_strided_slice %19 {offsets = [0, 22], sizes = [8, 78], strides = [1, 1]} : vector<8x100xbf16> to vector<8x78xbf16>
    %29 = tpu.concatenate %20, %21, %22, %23, %24, %25, %26, %27, %28 in 0 : vector<8x78xbf16>, vector<8x78xbf16>, vector<8x78xbf16>, vector<8x78xbf16>, vector<8x78xbf16>, vector<8x78xbf16>, vector<8x78xbf16>, vector<8x78xbf16>, vector<8x78xbf16> -> vector<72x78xbf16>
    %cst_10 = arith.constant dense<0.000000e+00> : vector<8x78xf32>
    %30 = tpu.matmul %18, %29, %cst_10 {dimension_numbers = #tpu.dot_dimension_numbers<[1], [0], [0], [1], [0, 0, 1, 1], [], []>} : vector<8x72xbf16>, vector<72x78xbf16>, vector<8x78xf32> -> vector<8x78xf32>
    %c0_11 = arith.constant 0 : index
    %c0_12 = arith.constant 0 : index
    %c11 = arith.constant 11 : index
    %31 = vector.load %arg2[%c0_11, %c0_12, %c11] : memref<1x8x100xf32, #tpu.memory_space<vmem>>, vector<1x8x78xf32>
    %32 = vector.shape_cast %31 : vector<1x8x78xf32> to vector<8x78xf32>
    %33 = arith.addf %30, %32 : vector<8x78xf32>
    %cst_13 = arith.constant 0.000000e+00 : f32
    %34 = vector.broadcast %cst_13 : f32 to vector<8x78xf32>
    %35 = arith.maximumf %33, %34 : vector<8x78xf32>
    %c0_14 = arith.constant 0 : index
    %c0_15 = arith.constant 0 : index
    %36 = vector.load %arg12[%c0_14, %c0_15] : memref<78x64xf32, #tpu.memory_space<vmem>>, vector<78x64xf32>
    %cst_16 = arith.constant dense<0.000000e+00> : vector<8x64xf32>
    %37 = tpu.matmul %35, %36, %cst_16 {dimension_numbers = #tpu.dot_dimension_numbers<[1], [0], [0], [1], [0, 0, 1, 1], [], []>} : vector<8x78xf32>, vector<78x64xf32>, vector<8x64xf32> -> vector<8x64xf32>
    %c0_17 = arith.constant 0 : index
    %c0_18 = arith.constant 0 : index
    %c0_19 = arith.constant 0 : index
    %38 = vector.load %arg19[%c0_17, %c0_18, %c0_19] : memref<1x8x64xf32, #tpu.memory_space<vmem>>, vector<1x8x64xf32>
    %39 = vector.shape_cast %38 : vector<1x8x64xf32> to vector<8x64xf32>
    %40 = vector.shape_cast %37 : vector<8x64xf32> to vector<1x8x64xf32>
    tpu.vector_store %arg19[%c0_17, %c0_18, %c0_19], %40 {strides = array<i32>} : memref<1x8x64xf32, #tpu.memory_space<vmem>>, vector<1x8x64xf32>,
    %c0_20 = arith.constant 0 : index
    %c0_21 = arith.constant 0 : index
    %41 = vector.load %arg11[%c0_20, %c0_21] : memref<78x100xf32, #tpu.memory_space<vmem>>, vector<78x100xf32>
    %cst_22 = arith.constant dense<0.000000e+00> : vector<8x100xf32>
    %42 = tpu.matmul %35, %41, %cst_22 {dimension_numbers = #tpu.dot_dimension_numbers<[1], [0], [0], [1], [0, 0, 1, 1], [], []>} : vector<8x78xf32>, vector<78x100xf32>, vector<8x100xf32> -> vector<8x100xf32>
    %c0_23 = arith.constant 0 : index
    %c0_24 = arith.constant 0 : index
    %43 = vector.load %arg6[%c0_23, %c0_24] : memref<8x72xbf16, #tpu.memory_space<vmem>>, vector<8x72xbf16>
    %44 = arith.truncf %42 : vector<8x100xf32> to vector<8x100xbf16>
    %45 = vector.extract_strided_slice %44 {offsets = [0, 0], sizes = [8, 78], strides = [1, 1]} : vector<8x100xbf16> to vector<8x78xbf16>
    %46 = vector.extract_strided_slice %44 {offsets = [0, 1], sizes = [8, 78], strides = [1, 1]} : vector<8x100xbf16> to vector<8x78xbf16>
    %47 = vector.extract_strided_slice %44 {offsets = [0, 2], sizes = [8, 78], strides = [1, 1]} : vector<8x100xbf16> to vector<8x78xbf16>
    %48 = vector.extract_strided_slice %44 {offsets = [0, 10], sizes = [8, 78], strides = [1, 1]} : vector<8x100xbf16> to vector<8x78xbf16>
    %49 = vector.extract_strided_slice %44 {offsets = [0, 11], sizes = [8, 78], strides = [1, 1]} : vector<8x100xbf16> to vector<8x78xbf16>
    %50 = vector.extract_strided_slice %44 {offsets = [0, 12], sizes = [8, 78], strides = [1, 1]} : vector<8x100xbf16> to vector<8x78xbf16>
    %51 = vector.extract_strided_slice %44 {offsets = [0, 20], sizes = [8, 78], strides = [1, 1]} : vector<8x100xbf16> to vector<8x78xbf16>
    %52 = vector.extract_strided_slice %44 {offsets = [0, 21], sizes = [8, 78], strides = [1, 1]} : vector<8x100xbf16> to vector<8x78xbf16>
    %53 = vector.extract_strided_slice %44 {offsets = [0, 22], sizes = [8, 78], strides = [1, 1]} : vector<8x100xbf16> to vector<8x78xbf16>
    %54 = tpu.concatenate %45, %46, %47, %48, %49, %50, %51, %52, %53 in 0 : vector<8x78xbf16>, vector<8x78xbf16>, vector<8x78xbf16>, vector<8x78xbf16>, vector<8x78xbf16>, vector<8x78xbf16>, vector<8x78xbf16>, vector<8x78xbf16>, vector<8x78xbf16> -> vector<72x78xbf16>
    %cst_25 = arith.constant dense<0.000000e+00> : vector<8x78xf32>
    %55 = tpu.matmul %43, %54, %cst_25 {dimension_numbers = #tpu.dot_dimension_numbers<[1], [0], [0], [1], [0, 0, 1, 1], [], []>} : vector<8x72xbf16>, vector<72x78xbf16>, vector<8x78xf32> -> vector<8x78xf32>
    %c0_26 = arith.constant 0 : index
    %c0_27 = arith.constant 0 : index
    %56 = vector.load %arg13[%c0_26, %c0_27] : memref<78x36xf32, #tpu.memory_space<vmem>>, vector<78x36xf32>
    %cst_28 = arith.constant dense<0.000000e+00> : vector<8x36xf32>
    %57 = tpu.matmul %55, %56, %cst_28 {dimension_numbers = #tpu.dot_dimension_numbers<[1], [0], [0], [1], [0, 0, 1, 1], [], []>} : vector<8x78xf32>, vector<78x36xf32>, vector<8x36xf32> -> vector<8x36xf32>
    %cst_29 = arith.constant 0.000000e+00 : f32
    %58 = vector.broadcast %cst_29 : f32 to vector<8x36xf32>
    %59 = arith.maximumf %57, %58 : vector<8x36xf32>
    %c0_30 = arith.constant 0 : index
    %c0_31 = arith.constant 0 : index
    %60 = vector.load %arg7[%c0_30, %c0_31] : memref<16x72xbf16, #tpu.memory_space<vmem>>, vector<16x72xbf16>
    %61 = arith.truncf %59 : vector<8x36xf32> to vector<8x36xbf16>
    %62 = vector.extract_strided_slice %61 {offsets = [0, 0], sizes = [8, 22], strides = [1, 1]} : vector<8x36xbf16> to vector<8x22xbf16>
    %63 = vector.extract_strided_slice %61 {offsets = [0, 1], sizes = [8, 22], strides = [1, 1]} : vector<8x36xbf16> to vector<8x22xbf16>
    %64 = vector.extract_strided_slice %61 {offsets = [0, 2], sizes = [8, 22], strides = [1, 1]} : vector<8x36xbf16> to vector<8x22xbf16>
    %65 = vector.extract_strided_slice %61 {offsets = [0, 6], sizes = [8, 22], strides = [1, 1]} : vector<8x36xbf16> to vector<8x22xbf16>
    %66 = vector.extract_strided_slice %61 {offsets = [0, 7], sizes = [8, 22], strides = [1, 1]} : vector<8x36xbf16> to vector<8x22xbf16>
    %67 = vector.extract_strided_slice %61 {offsets = [0, 8], sizes = [8, 22], strides = [1, 1]} : vector<8x36xbf16> to vector<8x22xbf16>
    %68 = vector.extract_strided_slice %61 {offsets = [0, 12], sizes = [8, 22], strides = [1, 1]} : vector<8x36xbf16> to vector<8x22xbf16>
    %69 = vector.extract_strided_slice %61 {offsets = [0, 13], sizes = [8, 22], strides = [1, 1]} : vector<8x36xbf16> to vector<8x22xbf16>
    %70 = vector.extract_strided_slice %61 {offsets = [0, 14], sizes = [8, 22], strides = [1, 1]} : vector<8x36xbf16> to vector<8x22xbf16>
    %71 = tpu.concatenate %62, %63, %64, %65, %66, %67, %68, %69, %70 in 0 : vector<8x22xbf16>, vector<8x22xbf16>, vector<8x22xbf16>, vector<8x22xbf16>, vector<8x22xbf16>, vector<8x22xbf16>, vector<8x22xbf16>, vector<8x22xbf16>, vector<8x22xbf16> -> vector<72x22xbf16>
    %cst_32 = arith.constant dense<0.000000e+00> : vector<16x22xf32>
    %72 = tpu.matmul %60, %71, %cst_32 {dimension_numbers = #tpu.dot_dimension_numbers<[1], [0], [0], [1], [0, 0, 1, 1], [], []>} : vector<16x72xbf16>, vector<72x22xbf16>, vector<16x22xf32> -> vector<16x22xf32>
    %c0_33 = arith.constant 0 : index
    %c0_34 = arith.constant 0 : index
    %c7 = arith.constant 7 : index
    %73 = vector.load %arg3[%c0_33, %c0_34, %c7] : memref<1x16x36xf32, #tpu.memory_space<vmem>>, vector<1x16x22xf32>
    %74 = vector.shape_cast %73 : vector<1x16x22xf32> to vector<16x22xf32>
    %75 = arith.addf %72, %74 : vector<16x22xf32>
    %cst_35 = arith.constant 0.000000e+00 : f32
    %76 = vector.broadcast %cst_35 : f32 to vector<16x22xf32>
    %77 = arith.maximumf %75, %76 : vector<16x22xf32>
    %c0_36 = arith.constant 0 : index
    %c0_37 = arith.constant 0 : index
    %78 = vector.load %arg15[%c0_36, %c0_37] : memref<22x16xf32, #tpu.memory_space<vmem>>, vector<22x16xf32>
    %cst_38 = arith.constant dense<0.000000e+00> : vector<16x16xf32>
    %79 = tpu.matmul %77, %78, %cst_38 {dimension_numbers = #tpu.dot_dimension_numbers<[1], [0], [0], [1], [0, 0, 1, 1], [], []>} : vector<16x22xf32>, vector<22x16xf32>, vector<16x16xf32> -> vector<16x16xf32>
    %c0_39 = arith.constant 0 : index
    %c0_40 = arith.constant 0 : index
    %c0_41 = arith.constant 0 : index
    %80 = vector.load %arg20[%c0_39, %c0_40, %c0_41] : memref<1x16x16xf32, #tpu.memory_space<vmem>>, vector<1x16x16xf32>
    %81 = vector.shape_cast %80 : vector<1x16x16xf32> to vector<16x16xf32>
    %82 = vector.shape_cast %79 : vector<16x16xf32> to vector<1x16x16xf32>
    tpu.vector_store %arg20[%c0_39, %c0_40, %c0_41], %82 {strides = array<i32>} : memref<1x16x16xf32, #tpu.memory_space<vmem>>, vector<1x16x16xf32>,
    %c0_42 = arith.constant 0 : index
    %c0_43 = arith.constant 0 : index
    %83 = vector.load %arg14[%c0_42, %c0_43] : memref<22x36xf32, #tpu.memory_space<vmem>>, vector<22x36xf32>
    %cst_44 = arith.constant dense<0.000000e+00> : vector<16x36xf32>
    %84 = tpu.matmul %77, %83, %cst_44 {dimension_numbers = #tpu.dot_dimension_numbers<[1], [0], [0], [1], [0, 0, 1, 1], [], []>} : vector<16x22xf32>, vector<22x36xf32>, vector<16x36xf32> -> vector<16x36xf32>
    %c0_45 = arith.constant 0 : index
    %c0_46 = arith.constant 0 : index
    %85 = vector.load %arg8[%c0_45, %c0_46] : memref<32x64xbf16, #tpu.memory_space<vmem>>, vector<32x64xbf16>
    %86 = arith.truncf %84 : vector<16x36xf32> to vector<16x36xbf16>
    %87 = vector.extract_strided_slice %86 {offsets = [0, 7], sizes = [16, 22], strides = [1, 1]} : vector<16x36xbf16> to vector<16x22xbf16>
    %88 = vector.extract_strided_slice %86 {offsets = [0, 8], sizes = [16, 22], strides = [1, 1]} : vector<16x36xbf16> to vector<16x22xbf16>
    %89 = vector.extract_strided_slice %86 {offsets = [0, 13], sizes = [16, 22], strides = [1, 1]} : vector<16x36xbf16> to vector<16x22xbf16>
    %90 = vector.extract_strided_slice %86 {offsets = [0, 14], sizes = [16, 22], strides = [1, 1]} : vector<16x36xbf16> to vector<16x22xbf16>
    %91 = tpu.concatenate %87, %88, %89, %90 in 0 : vector<16x22xbf16>, vector<16x22xbf16>, vector<16x22xbf16>, vector<16x22xbf16> -> vector<64x22xbf16>
    %cst_47 = arith.constant dense<0.000000e+00> : vector<32x22xf32>
    %92 = tpu.matmul %85, %91, %cst_47 {dimension_numbers = #tpu.dot_dimension_numbers<[1], [0], [0], [1], [0, 0, 1, 1], [], []>} : vector<32x64xbf16>, vector<64x22xbf16>, vector<32x22xf32> -> vector<32x22xf32>
    %93 = vector.extract_strided_slice %92 {offsets = [0, 0], sizes = [8, 22], strides = [1, 1]} : vector<32x22xf32> to vector<8x22xf32>
    %94 = vector.extract_strided_slice %92 {offsets = [8, 0], sizes = [8, 22], strides = [1, 1]} : vector<32x22xf32> to vector<8x22xf32>
    %95 = vector.extract_strided_slice %92 {offsets = [16, 0], sizes = [8, 22], strides = [1, 1]} : vector<32x22xf32> to vector<8x22xf32>
    %96 = vector.extract_strided_slice %92 {offsets = [24, 0], sizes = [8, 22], strides = [1, 1]} : vector<32x22xf32> to vector<8x22xf32>
    %97 = tpu.concatenate %93, %94, %95, %96 in 1 : vector<8x22xf32>, vector<8x22xf32>, vector<8x22xf32>, vector<8x22xf32> -> vector<8x88xf32>
    %c0_48 = arith.constant 0 : index
    %c0_49 = arith.constant 0 : index
    %98 = vector.load %arg16[%c0_48, %c0_49] : memref<88x100xf32, #tpu.memory_space<vmem>>, vector<88x100xf32>
    %cst_50 = arith.constant dense<0.000000e+00> : vector<8x100xf32>
    %99 = tpu.matmul %97, %98, %cst_50 {dimension_numbers = #tpu.dot_dimension_numbers<[1], [0], [0], [1], [0, 0, 1, 1], [], []>} : vector<8x88xf32>, vector<88x100xf32>, vector<8x100xf32> -> vector<8x100xf32>
    %cst_51 = arith.constant 0.000000e+00 : f32
    %100 = vector.broadcast %cst_51 : f32 to vector<8x100xf32>
    %101 = arith.maximumf %99, %100 : vector<8x100xf32>
    %c0_52 = arith.constant 0 : index
    %c0_53 = arith.constant 0 : index
    %102 = vector.load %arg9[%c0_52, %c0_53] : memref<16x32xbf16, #tpu.memory_space<vmem>>, vector<16x32xbf16>
    %103 = arith.truncf %101 : vector<8x100xf32> to vector<8x100xbf16>
    %104 = vector.extract_strided_slice %103 {offsets = [0, 11], sizes = [8, 78], strides = [1, 1]} : vector<8x100xbf16> to vector<8x78xbf16>
    %105 = vector.extract_strided_slice %103 {offsets = [0, 12], sizes = [8, 78], strides = [1, 1]} : vector<8x100xbf16> to vector<8x78xbf16>
    %106 = vector.extract_strided_slice %103 {offsets = [0, 21], sizes = [8, 78], strides = [1, 1]} : vector<8x100xbf16> to vector<8x78xbf16>
    %107 = vector.extract_strided_slice %103 {offsets = [0, 22], sizes = [8, 78], strides = [1, 1]} : vector<8x100xbf16> to vector<8x78xbf16>
    %108 = tpu.concatenate %104, %105, %106, %107 in 0 : vector<8x78xbf16>, vector<8x78xbf16>, vector<8x78xbf16>, vector<8x78xbf16> -> vector<32x78xbf16>
    %cst_54 = arith.constant dense<0.000000e+00> : vector<16x78xf32>
    %109 = tpu.matmul %102, %108, %cst_54 {dimension_numbers = #tpu.dot_dimension_numbers<[1], [0], [0], [1], [0, 0, 1, 1], [], []>} : vector<16x32xbf16>, vector<32x78xbf16>, vector<16x78xf32> -> vector<16x78xf32>
    %110 = vector.extract_strided_slice %109 {offsets = [0, 0], sizes = [4, 78], strides = [1, 1]} : vector<16x78xf32> to vector<4x78xf32>
    %111 = vector.extract_strided_slice %109 {offsets = [4, 0], sizes = [4, 78], strides = [1, 1]} : vector<16x78xf32> to vector<4x78xf32>
    %112 = vector.extract_strided_slice %109 {offsets = [8, 0], sizes = [4, 78], strides = [1, 1]} : vector<16x78xf32> to vector<4x78xf32>
    %113 = vector.extract_strided_slice %109 {offsets = [12, 0], sizes = [4, 78], strides = [1, 1]} : vector<16x78xf32> to vector<4x78xf32>
    %114 = tpu.concatenate %110, %111, %112, %113 in 1 : vector<4x78xf32>, vector<4x78xf32>, vector<4x78xf32>, vector<4x78xf32> -> vector<4x312xf32>
    %c0_55 = arith.constant 0 : index
    %c0_56 = arith.constant 0 : index
    %115 = vector.load %arg17[%c0_55, %c0_56] : memref<312x256xf32, #tpu.memory_space<vmem>>, vector<312x256xf32>
    %cst_57 = arith.constant dense<0.000000e+00> : vector<4x256xf32>
    %116 = tpu.matmul %114, %115, %cst_57 {dimension_numbers = #tpu.dot_dimension_numbers<[1], [0], [0], [1], [0, 0, 1, 1], [], []>} : vector<4x312xf32>, vector<312x256xf32>, vector<4x256xf32> -> vector<4x256xf32>
    %c0_58 = arith.constant 0 : index
    %c0_59 = arith.constant 0 : index
    %c0_60 = arith.constant 0 : index
    %117 = vector.load %arg18[%c0_58, %c0_59, %c0_60] : memref<1x4x256xf32, #tpu.memory_space<vmem>>, vector<1x4x256xf32>
    %118 = vector.shape_cast %117 : vector<1x4x256xf32> to vector<4x256xf32>
    %119 = vector.shape_cast %116 : vector<4x256xf32> to vector<1x4x256xf32>
    tpu.vector_store %arg18[%c0_58, %c0_59, %c0_60], %119 {strides = array<i32>} : memref<1x4x256xf32, #tpu.memory_space<vmem>>, vector<1x4x256xf32>,
    return
  }
  func.func @transform_0(%arg0: i32) -> (i32, i32, i32) {
    %c0_i32 = arith.constant 0 : i32
    %c0_i32_0 = arith.constant 0 : i32
    %c0_i32_1 = arith.constant 0 : i32
    return %arg0, %c0_i32, %c0_i32_0 : i32, i32, i32
  }
  func.func @transform_1(%arg0: i32) -> (i32, i32, i32) {
    %c0_i32 = arith.constant 0 : i32
    %c0_i32_0 = arith.constant 0 : i32
    %c0_i32_1 = arith.constant 0 : i32
    return %arg0, %c0_i32, %c0_i32_0 : i32, i32, i32
  }
  func.func @transform_2(%arg0: i32) -> (i32, i32, i32) {
    %c0_i32 = arith.constant 0 : i32
    %c0_i32_0 = arith.constant 0 : i32
    %c0_i32_1 = arith.constant 0 : i32
    return %arg0, %c0_i32, %c0_i32_0 : i32, i32, i32
  }
  func.func @transform_3(%arg0: i32) -> (i32, i32) {
    %c0_i32 = arith.constant 0 : i32
    %c0_i32_0 = arith.constant 0 : i32
    %c0_i32_1 = arith.constant 0 : i32
    return %c0_i32, %c0_i32_0 : i32, i32
  }
  func.func @transform_4(%arg0: i32) -> (i32, i32) {
    %c0_i32 = arith.constant 0 : i32
    %c0_i32_0 = arith.constant 0 : i32
    %c0_i32_1 = arith.constant 0 : i32
    return %c0_i32, %c0_i32_0 : i32, i32
  }
  func.func @transform_5(%arg0: i32) -> (i32, i32) {
    %c0_i32 = arith.constant 0 : i32
    %c0_i32_0 = arith.constant 0 : i32
    %c0_i32_1 = arith.constant 0 : i32
    return %c0_i32, %c0_i32_0 : i32, i32
  }
  func.func @transform_6(%arg0: i32) -> (i32, i32) {
    %c0_i32 = arith.constant 0 : i32
    %c0_i32_0 = arith.constant 0 : i32
    %c0_i32_1 = arith.constant 0 : i32
    return %c0_i32, %c0_i32_0 : i32, i32
  }
  func.func @transform_7(%arg0: i32) -> (i32, i32) {
    %c0_i32 = arith.constant 0 : i32
    %c0_i32_0 = arith.constant 0 : i32
    %c0_i32_1 = arith.constant 0 : i32
    return %c0_i32, %c0_i32_0 : i32, i32
  }
  func.func @transform_8(%arg0: i32) -> (i32, i32) {
    %c0_i32 = arith.constant 0 : i32
    %c0_i32_0 = arith.constant 0 : i32
    %c0_i32_1 = arith.constant 0 : i32
    return %c0_i32, %c0_i32_0 : i32, i32
  }
  func.func @transform_9(%arg0: i32) -> (i32, i32) {
    %c0_i32 = arith.constant 0 : i32
    %c0_i32_0 = arith.constant 0 : i32
    %c0_i32_1 = arith.constant 0 : i32
    return %c0_i32, %c0_i32_0 : i32, i32
  }
  func.func @transform_10(%arg0: i32) -> (i32, i32) {
    %c0_i32 = arith.constant 0 : i32
    %c0_i32_0 = arith.constant 0 : i32
    %c0_i32_1 = arith.constant 0 : i32
    return %c0_i32, %c0_i32_0 : i32, i32
  }
  func.func @transform_11(%arg0: i32) -> (i32, i32) {
    %c0_i32 = arith.constant 0 : i32
    %c0_i32_0 = arith.constant 0 : i32
    %c0_i32_1 = arith.constant 0 : i32
    return %c0_i32, %c0_i32_0 : i32, i32
  }
  func.func @transform_12(%arg0: i32) -> (i32, i32) {
    %c0_i32 = arith.constant 0 : i32
    %c0_i32_0 = arith.constant 0 : i32
    %c0_i32_1 = arith.constant 0 : i32
    return %c0_i32, %c0_i32_0 : i32, i32
  }
  func.func @transform_13(%arg0: i32) -> (i32, i32) {
    %c0_i32 = arith.constant 0 : i32
    %c0_i32_0 = arith.constant 0 : i32
    %c0_i32_1 = arith.constant 0 : i32
    return %c0_i32, %c0_i32_0 : i32, i32
  }
  func.func @transform_14(%arg0: i32) -> (i32, i32) {
    %c0_i32 = arith.constant 0 : i32
    %c0_i32_0 = arith.constant 0 : i32
    %c0_i32_1 = arith.constant 0 : i32
    return %c0_i32, %c0_i32_0 : i32, i32
  }
  func.func @transform_15(%arg0: i32) -> (i32, i32) {
    %c0_i32 = arith.constant 0 : i32
    %c0_i32_0 = arith.constant 0 : i32
    %c0_i32_1 = arith.constant 0 : i32
    return %c0_i32, %c0_i32_0 : i32, i32
  }
  func.func @transform_16(%arg0: i32) -> (i32, i32) {
    %c0_i32 = arith.constant 0 : i32
    %c0_i32_0 = arith.constant 0 : i32
    %c0_i32_1 = arith.constant 0 : i32
    return %c0_i32, %c0_i32_0 : i32, i32
  }
  func.func @transform_17(%arg0: i32) -> (i32, i32, i32) {
    %c0_i32 = arith.constant 0 : i32
    %c0_i32_0 = arith.constant 0 : i32
    %c0_i32_1 = arith.constant 0 : i32
    return %arg0, %c0_i32, %c0_i32_0 : i32, i32, i32
  }
  func.func @transform_18(%arg0: i32) -> (i32, i32, i32) {
    %c0_i32 = arith.constant 0 : i32
    %c0_i32_0 = arith.constant 0 : i32
    %c0_i32_1 = arith.constant 0 : i32
    return %arg0, %c0_i32, %c0_i32_0 : i32, i32, i32
  }
  func.func @transform_19(%arg0: i32) -> (i32, i32, i32) {
    %c0_i32 = arith.constant 0 : i32
    %c0_i32_0 = arith.constant 0 : i32
    %c0_i32_1 = arith.constant 0 : i32
    return %arg0, %c0_i32, %c0_i32_0 : i32, i32, i32
  }
}

</mosaic_0001>

<llo_original>
// kernel: hourglass_2_forward.1
$region0: #{hourglass_2_forward.1}
  #allocation0 [shape = 'u32[]', space=smem, size = 0x4, offset = 0x4, fixed_abs, tag = 'smem constant byte address 0x4 - core index']
  #allocation1 [shape = 'u32[144,128]{1,0:T(1,128)}', space=vmem, size = 0x12000, scoped, tag = 'internal scratch']
  %s0 = inlined_call_operand.vmem [shape: bf16[2,4,324], index: 0, kind: input, shape index: {}]
  %s1 = inlined_call_operand.vmem [shape: f32[2,8,100], index: 1, kind: input, shape index: {}]
  %s2 = inlined_call_operand.vmem [shape: f32[2,16,36], index: 2, kind: input, shape index: {}]
  %s3 = inlined_call_operand.vmem [shape: bf16[8,36], index: 3, kind: input, shape index: {}]
  %s4 = inlined_call_operand.vmem [shape: bf16[8,72], index: 4, kind: input, shape index: {}]
  %s5 = inlined_call_operand.vmem [shape: bf16[8,72], index: 5, kind: input, shape index: {}]
  %s6 = inlined_call_operand.vmem [shape: bf16[16,72], index: 6, kind: input, shape index: {}]
  %s7 = inlined_call_operand.vmem [shape: bf16[32,64], index: 7, kind: input, shape index: {}]
  %s8 = inlined_call_operand.vmem [shape: bf16[16,32], index: 8, kind: input, shape index: {}]
  %s9 = inlined_call_operand.vmem [shape: f32[286,100], index: 9, kind: input, shape index: {}]
  %s10 = inlined_call_operand.vmem [shape: f32[78,100], index: 10, kind: input, shape index: {}]
  %s11 = inlined_call_operand.vmem [shape: f32[78,64], index: 11, kind: input, shape index: {}]
  %s12 = inlined_call_operand.vmem [shape: f32[78,36], index: 12, kind: input, shape index: {}]
  %s13 = inlined_call_operand.vmem [shape: f32[22,36], index: 13, kind: input, shape index: {}]
  %s14 = inlined_call_operand.vmem [shape: f32[22,16], index: 14, kind: input, shape index: {}]
  %s15 = inlined_call_operand.vmem [shape: f32[88,100], index: 15, kind: input, shape index: {}]
  %s16 = inlined_call_operand.vmem [shape: f32[312,256], index: 16, kind: input, shape index: {}]
  %s17 = inlined_call_operand.vmem [shape: f32[2,4,256], index: 17, kind: output, shape index: {0}]
  %s18 = inlined_call_operand.vmem [shape: f32[2,8,64], index: 18, kind: output, shape index: {1}]
  %s19 = inlined_call_operand.vmem [shape: f32[2,16,16], index: 19, kind: output, shape index: {2}]
  %20 = xla_tuple %s17, %s18, %s19
  %s21 = sld [smem:[#allocation0]]
  $region117: #{hourglass_2_forward.1} parent=0
    _
  %s23 = ssub.s32 1, %s21
  %s24 = scalar_select 0, %s23, %s21
  loop: start=0, step=1, limit=4
  $region2: #{hourglass_2_forward.1} parent=0 // loop_pre_header
    _
  $region3: #{hourglass_2_forward.1} parent=0 // loop_header
    %s26 = sphi 0, %s30
    %p27 = scmp.ge.s32.totalorder %s26, 4
    %s36 = sphi 0, %s38
    %s39 = sphi 0, %s36
    %s40 = sphi 0, %s39
    %s56 = sphi 0, %s40
    %s62 = sphi 0, %s64
    %s65 = sphi 0, %s62
    %s66 = sphi 0, %s65
    %s82 = sphi 0, %s66
    %s88 = sphi 0, %s90
    %s91 = sphi 0, %s88
    %s92 = sphi 0, %s91
    %s108 = sphi 0, %s92
    %s112 = sphi 0, %s112
    %s114 = sphi 0, %s112
    %s115 = sphi 0, %s114
    %s129 = sphi 0, %s115
    %s133 = sphi 0, %s133
    %s135 = sphi 0, %s133
    %s136 = sphi 0, %s135
    %s150 = sphi 0, %s136
    %s154 = sphi 0, %s154
    %s156 = sphi 0, %s154
    %s157 = sphi 0, %s156
    %s171 = sphi 0, %s157
    %s175 = sphi 0, %s175
    %s177 = sphi 0, %s175
    %s178 = sphi 0, %s177
    %s192 = sphi 0, %s178
    %s196 = sphi 0, %s196
    %s198 = sphi 0, %s196
    %s199 = sphi 0, %s198
    %s213 = sphi 0, %s199
    %s217 = sphi 0, %s217
    %s219 = sphi 0, %s217
    %s220 = sphi 0, %s219
    %s234 = sphi 0, %s220
    %s238 = sphi 0, %s238
    %s240 = sphi 0, %s238
    %s241 = sphi 0, %s240
    %s255 = sphi 0, %s241
    %s259 = sphi 0, %s259
    %s261 = sphi 0, %s259
    %s262 = sphi 0, %s261
    %s276 = sphi 0, %s262
    %s280 = sphi 0, %s280
    %s282 = sphi 0, %s280
    %s283 = sphi 0, %s282
    %s297 = sphi 0, %s283
    %s301 = sphi 0, %s301
    %s303 = sphi 0, %s301
    %s304 = sphi 0, %s303
    %s318 = sphi 0, %s304
    %s322 = sphi 0, %s322
    %s324 = sphi 0, %s322
    %s325 = sphi 0, %s324
    %s339 = sphi 0, %s325
    %s343 = sphi 0, %s343
    %s345 = sphi 0, %s343
    %s346 = sphi 0, %s345
    %s360 = sphi 0, %s346
    %s364 = sphi 0, %s364
    %s366 = sphi 0, %s364
    %s367 = sphi 0, %s366
    %s381 = sphi 0, %s367
    %s385 = sphi 0, %s385
    %s387 = sphi 0, %s385
    %s388 = sphi 0, %s387
    %s402 = sphi 0, %s388
    %s408 = sphi 0, %s410
    %s411 = sphi 0, %s408
    %s412 = sphi 0, %s411
    %s428 = sphi 0, %s412
    %s434 = sphi 0, %s436
    %s437 = sphi 0, %s434
    %s438 = sphi 0, %s437
    %s454 = sphi 0, %s438
    %s460 = sphi 0, %s462
    %s463 = sphi 0, %s460
    %s464 = sphi 0, %s463
    %s480 = sphi 0, %s464
  $region4: #{hourglass_2_forward.1} parent=0 // loop_header_branch
    %29 = sbr.rel (%p27) target = $region8
  $region5: #{hourglass_2_forward.1} parent=0 // loop_body
    %s31 = ssub.s32 %s26, 1
    %s32 = ssub.s32 %s26, 2
    %s33 = sadd.s32 %s26, 1
    %s34 = ssub.s32 %s26, %s33
    %p35 = scmp.eq.s32.totalorder %s34, 0
    %s37 = sadd.s32 %s36, 1
    %s38 = scalar_select %p35, %s36, %s37
    %p41 = pneg %p35
    %p42 = scmp.eq.s32.totalorder %s26, 1
    %p43 = por %p41, %p42
    %p44 = scmp.ne.s32.totalorder %s36, %s39
    %p45 = scmp.eq.s32.totalorder %s26, 0
    %p46 = por %p44, %p45
    %p47 = scmp.ne.s32.totalorder %s36, %s39
    %p48 = scmp.eq.s32.totalorder %s31, 1
    %p49 = por %p47, %p48
    %p50 = scmp.ne.s32.totalorder %s39, %s40
    %p51 = scmp.eq.s32.totalorder %s31, 0
    %p52 = por %p50, %p51
    %p53 = scmp.ne.s32.totalorder %s39, %s40
    %p54 = scmp.eq.s32.totalorder %s32, 1
    %p55 = por %p53, %p54
    %p57 = scmp.ne.s32.totalorder %s40, %s56
    %p58 = scmp.eq.s32.totalorder %s32, 0
    %p59 = por %p57, %p58
    %s60 = ssub.s32 %s26, %s33
    %p61 = scmp.eq.s32.totalorder %s60, 0
    %s63 = sadd.s32 %s62, 1
    %s64 = scalar_select %p61, %s62, %s63
    %p67 = pneg %p61
    %p68 = scmp.eq.s32.totalorder %s26, 1
    %p69 = por %p67, %p68
    %p70 = scmp.ne.s32.totalorder %s62, %s65
    %p71 = scmp.eq.s32.totalorder %s26, 0
    %p72 = por %p70, %p71
    %p73 = scmp.ne.s32.totalorder %s62, %s65
    %p74 = scmp.eq.s32.totalorder %s31, 1
    %p75 = por %p73, %p74
    %p76 = scmp.ne.s32.totalorder %s65, %s66
    %p77 = scmp.eq.s32.totalorder %s31, 0
    %p78 = por %p76, %p77
    %p79 = scmp.ne.s32.totalorder %s65, %s66
    %p80 = scmp.eq.s32.totalorder %s32, 1
    %p81 = por %p79, %p80
    %p83 = scmp.ne.s32.totalorder %s66, %s82
    %p84 = scmp.eq.s32.totalorder %s32, 0
    %p85 = por %p83, %p84
    %s86 = ssub.s32 %s26, %s33
    %p87 = scmp.eq.s32.totalorder %s86, 0
    %s89 = sadd.s32 %s88, 1
    %s90 = scalar_select %p87, %s88, %s89
    %p93 = pneg %p87
    %p94 = scmp.eq.s32.totalorder %s26, 1
    %p95 = por %p93, %p94
    %p96 = scmp.ne.s32.totalorder %s88, %s91
    %p97 = scmp.eq.s32.totalorder %s26, 0
    %p98 = por %p96, %p97
    %p99 = scmp.ne.s32.totalorder %s88, %s91
    %p100 = scmp.eq.s32.totalorder %s31, 1
    %p101 = por %p99, %p100
    %p102 = scmp.ne.s32.totalorder %s91, %s92
    %p103 = scmp.eq.s32.totalorder %s31, 0
    %p104 = por %p102, %p103
    %p105 = scmp.ne.s32.totalorder %s91, %s92
    %p106 = scmp.eq.s32.totalorder %s32, 1
    %p107 = por %p105, %p106
    %p109 = scmp.ne.s32.totalorder %s92, %s108
    %p110 = scmp.eq.s32.totalorder %s32, 0
    %p111 = por %p109, %p110
    %s113 = sadd.s32 %s112, 1
    %p116 = scmp.eq.s32.totalorder %s26, 1
    %p117 = scmp.ne.s32.totalorder %s112, %s114
    %p118 = scmp.eq.s32.totalorder %s26, 0
    %p119 = por %p117, %p118
    %p120 = scmp.ne.s32.totalorder %s112, %s114
    %p121 = scmp.eq.s32.totalorder %s31, 1
    %p122 = por %p120, %p121
    %p123 = scmp.ne.s32.totalorder %s114, %s115
    %p124 = scmp.eq.s32.totalorder %s31, 0
    %p125 = por %p123, %p124
    %p126 = scmp.ne.s32.totalorder %s114, %s115
    %p127 = scmp.eq.s32.totalorder %s32, 1
    %p128 = por %p126, %p127
    %p130 = scmp.ne.s32.totalorder %s115, %s129
    %p131 = scmp.eq.s32.totalorder %s32, 0
    %p132 = por %p130, %p131
    %s134 = sadd.s32 %s133, 1
    %p137 = scmp.eq.s32.totalorder %s26, 1
    %p138 = scmp.ne.s32.totalorder %s133, %s135
    %p139 = scmp.eq.s32.totalorder %s26, 0
    %p140 = por %p138, %p139
    %p141 = scmp.ne.s32.totalorder %s133, %s135
    %p142 = scmp.eq.s32.totalorder %s31, 1
    %p143 = por %p141, %p142
    %p144 = scmp.ne.s32.totalorder %s135, %s136
    %p145 = scmp.eq.s32.totalorder %s31, 0
    %p146 = por %p144, %p145
    %p147 = scmp.ne.s32.totalorder %s135, %s136
    %p148 = scmp.eq.s32.totalorder %s32, 1
    %p149 = por %p147, %p148
    %p151 = scmp.ne.s32.totalorder %s136, %s150
    %p152 = scmp.eq.s32.totalorder %s32, 0
    %p153 = por %p151, %p152
    %s155 = sadd.s32 %s154, 1
    %p158 = scmp.eq.s32.totalorder %s26, 1
    %p159 = scmp.ne.s32.totalorder %s154, %s156
    %p160 = scmp.eq.s32.totalorder %s26, 0
    %p161 = por %p159, %p160
    %p162 = scmp.ne.s32.totalorder %s154, %s156
    %p163 = scmp.eq.s32.totalorder %s31, 1
    %p164 = por %p162, %p163
    %p165 = scmp.ne.s32.totalorder %s156, %s157
    %p166 = scmp.eq.s32.totalorder %s31, 0
    %p167 = por %p165, %p166
    %p168 = scmp.ne.s32.totalorder %s156, %s157
    %p169 = scmp.eq.s32.totalorder %s32, 1
    %p170 = por %p168, %p169
    %p172 = scmp.ne.s32.totalorder %s157, %s171
    %p173 = scmp.eq.s32.totalorder %s32, 0
    %p174 = por %p172, %p173
    %s176 = sadd.s32 %s175, 1
    %p179 = scmp.eq.s32.totalorder %s26, 1
    %p180 = scmp.ne.s32.totalorder %s175, %s177
    %p181 = scmp.eq.s32.totalorder %s26, 0
    %p182 = por %p180, %p181
    %p183 = scmp.ne.s32.totalorder %s175, %s177
    %p184 = scmp.eq.s32.totalorder %s31, 1
    %p185 = por %p183, %p184
    %p186 = scmp.ne.s32.totalorder %s177, %s178
    %p187 = scmp.eq.s32.totalorder %s31, 0
    %p188 = por %p186, %p187
    %p189 = scmp.ne.s32.totalorder %s177, %s178
    %p190 = scmp.eq.s32.totalorder %s32, 1
    %p191 = por %p189, %p190
    %p193 = scmp.ne.s32.totalorder %s178, %s192
    %p194 = scmp.eq.s32.totalorder %s32, 0
    %p195 = por %p193, %p194
    %s197 = sadd.s32 %s196, 1
    %p200 = scmp.eq.s32.totalorder %s26, 1
    %p201 = scmp.ne.s32.totalorder %s196, %s198
    %p202 = scmp.eq.s32.totalorder %s26, 0
    %p203 = por %p201, %p202
    %p204 = scmp.ne.s32.totalorder %s196, %s198
    %p205 = scmp.eq.s32.totalorder %s31, 1
    %p206 = por %p204, %p205
    %p207 = scmp.ne.s32.totalorder %s198, %s199
    %p208 = scmp.eq.s32.totalorder %s31, 0
    %p209 = por %p207, %p208
    %p210 = scmp.ne.s32.totalorder %s198, %s199
    %p211 = scmp.eq.s32.totalorder %s32, 1
    %p212 = por %p210, %p211
    %p214 = scmp.ne.s32.totalorder %s199, %s213
    %p215 = scmp.eq.s32.totalorder %s32, 0
    %p216 = por %p214, %p215
    %s218 = sadd.s32 %s217, 1
    %p221 = scmp.eq.s32.totalorder %s26, 1
    %p222 = scmp.ne.s32.totalorder %s217, %s219
    %p223 = scmp.eq.s32.totalorder %s26, 0
    %p224 = por %p222, %p223
    %p225 = scmp.ne.s32.totalorder %s217, %s219
    %p226 = scmp.eq.s32.totalorder %s31, 1
    %p227 = por %p225, %p226
    %p228 = scmp.ne.s32.totalorder %s219, %s220
    %p229 = scmp.eq.s32.totalorder %s31, 0
    %p230 = por %p228, %p229
    %p231 = scmp.ne.s32.totalorder %s219, %s220
    %p232 = scmp.eq.s32.totalorder %s32, 1
    %p233 = por %p231, %p232
    %p235 = scmp.ne.s32.totalorder %s220, %s234
    %p236 = scmp.eq.s32.totalorder %s32, 0
    %p237 = por %p235, %p236
    %s239 = sadd.s32 %s238, 1
    %p242 = scmp.eq.s32.totalorder %s26, 1
    %p243 = scmp.ne.s32.totalorder %s238, %s240
    %p244 = scmp.eq.s32.totalorder %s26, 0
    %p245 = por %p243, %p244
    %p246 = scmp.ne.s32.totalorder %s238, %s240
    %p247 = scmp.eq.s32.totalorder %s31, 1
    %p248 = por %p246, %p247
    %p249 = scmp.ne.s32.totalorder %s240, %s241
    %p250 = scmp.eq.s32.totalorder %s31, 0
    %p251 = por %p249, %p250
    %p252 = scmp.ne.s32.totalorder %s240, %s241
    %p253 = scmp.eq.s32.totalorder %s32, 1
    %p254 = por %p252, %p253
    %p256 = scmp.ne.s32.totalorder %s241, %s255
    %p257 = scmp.eq.s32.totalorder %s32, 0
    %p258 = por %p256, %p257
    %s260 = sadd.s32 %s259, 1
    %p263 = scmp.eq.s32.totalorder %s26, 1
    %p264 = scmp.ne.s32.totalorder %s259, %s261
    %p265 = scmp.eq.s32.totalorder %s26, 0
    %p266 = por %p264, %p265
    %p267 = scmp.ne.s32.totalorder %s259, %s261
    %p268 = scmp.eq.s32.totalorder %s31, 1
    %p269 = por %p267, %p268
    %p270 = scmp.ne.s32.totalorder %s261, %s262
    %p271 = scmp.eq.s32.totalorder %s31, 0
    %p272 = por %p270, %p271
    %p273 = scmp.ne.s32.totalorder %s261, %s262
    %p274 = scmp.eq.s32.totalorder %s32, 1
    %p275 = por %p273, %p274
    %p277 = scmp.ne.s32.totalorder %s262, %s276
    %p278 = scmp.eq.s32.totalorder %s32, 0
    %p279 = por %p277, %p278
    %s281 = sadd.s32 %s280, 1
    %p284 = scmp.eq.s32.totalorder %s26, 1
    %p285 = scmp.ne.s32.totalorder %s280, %s282
    %p286 = scmp.eq.s32.totalorder %s26, 0
    %p287 = por %p285, %p286
    %p288 = scmp.ne.s32.totalorder %s280, %s282
    %p289 = scmp.eq.s32.totalorder %s31, 1
    %p290 = por %p288, %p289
    %p291 = scmp.ne.s32.totalorder %s282, %s283
    %p292 = scmp.eq.s32.totalorder %s31, 0
    %p293 = por %p291, %p292
    %p294 = scmp.ne.s32.totalorder %s282, %s283
    %p295 = scmp.eq.s32.totalorder %s32, 1
    %p296 = por %p294, %p295
    %p298 = scmp.ne.s32.totalorder %s283, %s297
    %p299 = scmp.eq.s32.totalorder %s32, 0
    %p300 = por %p298, %p299
    %s302 = sadd.s32 %s301, 1
    %p305 = scmp.eq.s32.totalorder %s26, 1
    %p306 = scmp.ne.s32.totalorder %s301, %s303
    %p307 = scmp.eq.s32.totalorder %s26, 0
    %p308 = por %p306, %p307
    %p309 = scmp.ne.s32.totalorder %s301, %s303
    %p310 = scmp.eq.s32.totalorder %s31, 1
    %p311 = por %p309, %p310
    %p312 = scmp.ne.s32.totalorder %s303, %s304
    %p313 = scmp.eq.s32.totalorder %s31, 0
    %p314 = por %p312, %p313
    %p315 = scmp.ne.s32.totalorder %s303, %s304
    %p316 = scmp.eq.s32.totalorder %s32, 1
    %p317 = por %p315, %p316
    %p319 = scmp.ne.s32.totalorder %s304, %s318
    %p320 = scmp.eq.s32.totalorder %s32, 0
    %p321 = por %p319, %p320
    %s323 = sadd.s32 %s322, 1
    %p326 = scmp.eq.s32.totalorder %s26, 1
    %p327 = scmp.ne.s32.totalorder %s322, %s324
    %p328 = scmp.eq.s32.totalorder %s26, 0
    %p329 = por %p327, %p328
    %p330 = scmp.ne.s32.totalorder %s322, %s324
    %p331 = scmp.eq.s32.totalorder %s31, 1
    %p332 = por %p330, %p331
    %p333 = scmp.ne.s32.totalorder %s324, %s325
    %p334 = scmp.eq.s32.totalorder %s31, 0
    %p335 = por %p333, %p334
    %p336 = scmp.ne.s32.totalorder %s324, %s325
    %p337 = scmp.eq.s32.totalorder %s32, 1
    %p338 = por %p336, %p337
    %p340 = scmp.ne.s32.totalorder %s325, %s339
    %p341 = scmp.eq.s32.totalorder %s32, 0
    %p342 = por %p340, %p341
    %s344 = sadd.s32 %s343, 1
    %p347 = scmp.eq.s32.totalorder %s26, 1
    %p348 = scmp.ne.s32.totalorder %s343, %s345
    %p349 = scmp.eq.s32.totalorder %s26, 0
    %p350 = por %p348, %p349
    %p351 = scmp.ne.s32.totalorder %s343, %s345
    %p352 = scmp.eq.s32.totalorder %s31, 1
    %p353 = por %p351, %p352
    %p354 = scmp.ne.s32.totalorder %s345, %s346
    %p355 = scmp.eq.s32.totalorder %s31, 0
    %p356 = por %p354, %p355
    %p357 = scmp.ne.s32.totalorder %s345, %s346
    %p358 = scmp.eq.s32.totalorder %s32, 1
    %p359 = por %p357, %p358
    %p361 = scmp.ne.s32.totalorder %s346, %s360
    %p362 = scmp.eq.s32.totalorder %s32, 0
    %p363 = por %p361, %p362
    %s365 = sadd.s32 %s364, 1
    %p368 = scmp.eq.s32.totalorder %s26, 1
    %p369 = scmp.ne.s32.totalorder %s364, %s366
    %p370 = scmp.eq.s32.totalorder %s26, 0
    %p371 = por %p369, %p370
    %p372 = scmp.ne.s32.totalorder %s364, %s366
    %p373 = scmp.eq.s32.totalorder %s31, 1
    %p374 = por %p372, %p373
    %p375 = scmp.ne.s32.totalorder %s366, %s367
    %p376 = scmp.eq.s32.totalorder %s31, 0
    %p377 = por %p375, %p376
    %p378 = scmp.ne.s32.totalorder %s366, %s367
    %p379 = scmp.eq.s32.totalorder %s32, 1
    %p380 = por %p378, %p379
    %p382 = scmp.ne.s32.totalorder %s367, %s381
    %p383 = scmp.eq.s32.totalorder %s32, 0
    %p384 = por %p382, %p383
    %s386 = sadd.s32 %s385, 1
    %p389 = scmp.eq.s32.totalorder %s26, 1
    %p390 = scmp.ne.s32.totalorder %s385, %s387
    %p391 = scmp.eq.s32.totalorder %s26, 0
    %p392 = por %p390, %p391
    %p393 = scmp.ne.s32.totalorder %s385, %s387
    %p394 = scmp.eq.s32.totalorder %s31, 1
    %p395 = por %p393, %p394
    %p396 = scmp.ne.s32.totalorder %s387, %s388
    %p397 = scmp.eq.s32.totalorder %s31, 0
    %p398 = por %p396, %p397
    %p399 = scmp.ne.s32.totalorder %s387, %s388
    %p400 = scmp.eq.s32.totalorder %s32, 1
    %p401 = por %p399, %p400
    %p403 = scmp.ne.s32.totalorder %s388, %s402
    %p404 = scmp.eq.s32.totalorder %s32, 0
    %p405 = por %p403, %p404
    %s406 = ssub.s32 %s26, %s33
    %p407 = scmp.eq.s32.totalorder %s406, 0
    %s409 = sadd.s32 %s408, 1
    %s410 = scalar_select %p407, %s408, %s409
    %p413 = pneg %p407
    %p414 = scmp.eq.s32.totalorder %s26, 1
    %p415 = por %p413, %p414
    %p416 = scmp.ne.s32.totalorder %s408, %s411
    %p417 = scmp.eq.s32.totalorder %s26, 0
    %p418 = por %p416, %p417
    %p419 = scmp.ne.s32.totalorder %s408, %s411
    %p420 = scmp.eq.s32.totalorder %s31, 1
    %p421 = por %p419, %p420
    %p422 = scmp.ne.s32.totalorder %s411, %s412
    %p423 = scmp.eq.s32.totalorder %s31, 0
    %p424 = por %p422, %p423
    %p425 = scmp.ne.s32.totalorder %s411, %s412
    %p426 = scmp.eq.s32.totalorder %s32, 1
    %p427 = por %p425, %p426
    %p429 = scmp.ne.s32.totalorder %s412, %s428
    %p430 = scmp.eq.s32.totalorder %s32, 0
    %p431 = por %p429, %p430
    %s432 = ssub.s32 %s26, %s33
    %p433 = scmp.eq.s32.totalorder %s432, 0
    %s435 = sadd.s32 %s434, 1
    %s436 = scalar_select %p433, %s434, %s435
    %p439 = pneg %p433
    %p440 = scmp.eq.s32.totalorder %s26, 1
    %p441 = por %p439, %p440
    %p442 = scmp.ne.s32.totalorder %s434, %s437
    %p443 = scmp.eq.s32.totalorder %s26, 0
    %p444 = por %p442, %p443
    %p445 = scmp.ne.s32.totalorder %s434, %s437
    %p446 = scmp.eq.s32.totalorder %s31, 1
    %p447 = por %p445, %p446
    %p448 = scmp.ne.s32.totalorder %s437, %s438
    %p449 = scmp.eq.s32.totalorder %s31, 0
    %p450 = por %p448, %p449
    %p451 = scmp.ne.s32.totalorder %s437, %s438
    %p452 = scmp.eq.s32.totalorder %s32, 1
    %p453 = por %p451, %p452
    %p455 = scmp.ne.s32.totalorder %s438, %s454
    %p456 = scmp.eq.s32.totalorder %s32, 0
    %p457 = por %p455, %p456
    %s458 = ssub.s32 %s26, %s33
    %p459 = scmp.eq.s32.totalorder %s458, 0
    %s461 = sadd.s32 %s460, 1
    %s462 = scalar_select %p459, %s460, %s461
    %p465 = pneg %p459
    %p466 = scmp.eq.s32.totalorder %s26, 1
    %p467 = por %p465, %p466
    %p468 = scmp.ne.s32.totalorder %s460, %s463
    %p469 = scmp.eq.s32.totalorder %s26, 0
    %p470 = por %p468, %p469
    %p471 = scmp.ne.s32.totalorder %s460, %s463
    %p472 = scmp.eq.s32.totalorder %s31, 1
    %p473 = por %p471, %p472
    %p474 = scmp.ne.s32.totalorder %s463, %s464
    %p475 = scmp.eq.s32.totalorder %s31, 0
    %p476 = por %p474, %p475
    %p477 = scmp.ne.s32.totalorder %s463, %s464
    %p478 = scmp.eq.s32.totalorder %s32, 1
    %p479 = por %p477, %p478
    %p481 = scmp.ne.s32.totalorder %s464, %s480
    %p482 = scmp.eq.s32.totalorder %s32, 0
    %p483 = por %p481, %p482
    %p484 = scmp.le.s32.totalorder 1, %s26
    %p485 = scmp.lt.s32.totalorder %s26, 3
    %p486 = pnand %p484, %p485
    %p487 = pneg %p486
    // Predicated region
    $region9: #{hourglass_2_forward.1} parent=5 // pred_check
      _
    $region10: #{hourglass_2_forward.1} parent=5 // pred_check_branch
      %489 = sbr.rel (%p486) target = $region12
    $region11: #{hourglass_2_forward.1} parent=5 // pred_region
      %s490 = ssub.s32 %s26, 1
      // Predicated region
      $region13: #{hourglass_2_forward.1} parent=11 // pred_check
        %p491 = pneg %p125
      $region14: #{hourglass_2_forward.1} parent=11 // pred_check_branch
        %493 = sbr.rel (%p491) target = $region16
      $region15: #{hourglass_2_forward.1} parent=11 // pred_region
        _
      $region16: #{hourglass_2_forward.1} parent=11 // pred_fallthru
        _
      // Predicated region
      $region17: #{hourglass_2_forward.1} parent=11 // pred_check
        %p494 = pneg %p146
      $region18: #{hourglass_2_forward.1} parent=11 // pred_check_branch
        %496 = sbr.rel (%p494) target = $region20
      $region19: #{hourglass_2_forward.1} parent=11 // pred_region
        _
      $region20: #{hourglass_2_forward.1} parent=11 // pred_fallthru
        _
      // Predicated region
      $region21: #{hourglass_2_forward.1} parent=11 // pred_check
        %p497 = pneg %p167
      $region22: #{hourglass_2_forward.1} parent=11 // pred_check_branch
        %499 = sbr.rel (%p497) target = $region24
      $region23: #{hourglass_2_forward.1} parent=11 // pred_region
        _
      $region24: #{hourglass_2_forward.1} parent=11 // pred_fallthru
        _
      // Predicated region
      $region25: #{hourglass_2_forward.1} parent=11 // pred_check
        %p500 = pneg %p188
      $region26: #{hourglass_2_forward.1} parent=11 // pred_check_branch
        %502 = sbr.rel (%p500) target = $region28
      $region27: #{hourglass_2_forward.1} parent=11 // pred_region
        _
      $region28: #{hourglass_2_forward.1} parent=11 // pred_fallthru
        _
      // Predicated region
      $region29: #{hourglass_2_forward.1} parent=11 // pred_check
        %p503 = pneg %p209
      $region30: #{hourglass_2_forward.1} parent=11 // pred_check_branch
        %505 = sbr.rel (%p503) target = $region32
      $region31: #{hourglass_2_forward.1} parent=11 // pred_region
        _
      $region32: #{hourglass_2_forward.1} parent=11 // pred_fallthru
        _
      // Predicated region
      $region33: #{hourglass_2_forward.1} parent=11 // pred_check
        %p506 = pneg %p230
      $region34: #{hourglass_2_forward.1} parent=11 // pred_check_branch
        %508 = sbr.rel (%p506) target = $region36
      $region35: #{hourglass_2_forward.1} parent=11 // pred_region
        _
      $region36: #{hourglass_2_forward.1} parent=11 // pred_fallthru
        _
      // Predicated region
      $region37: #{hourglass_2_forward.1} parent=11 // pred_check
        %p509 = pneg %p251
      $region38: #{hourglass_2_forward.1} parent=11 // pred_check_branch
        %511 = sbr.rel (%p509) target = $region40
      $region39: #{hourglass_2_forward.1} parent=11 // pred_region
        _
      $region40: #{hourglass_2_forward.1} parent=11 // pred_fallthru
        _
      // Predicated region
      $region41: #{hourglass_2_forward.1} parent=11 // pred_check
        %p512 = pneg %p272
      $region42: #{hourglass_2_forward.1} parent=11 // pred_check_branch
        %514 = sbr.rel (%p512) target = $region44
      $region43: #{hourglass_2_forward.1} parent=11 // pred_region
        _
      $region44: #{hourglass_2_forward.1} parent=11 // pred_fallthru
        _
      // Predicated region
      $region45: #{hourglass_2_forward.1} parent=11 // pred_check
        %p515 = pneg %p293
      $region46: #{hourglass_2_forward.1} parent=11 // pred_check_branch
        %517 = sbr.rel (%p515) target = $region48
      $region47: #{hourglass_2_forward.1} parent=11 // pred_region
        _
      $region48: #{hourglass_2_forward.1} parent=11 // pred_fallthru
        _
      // Predicated region
      $region49: #{hourglass_2_forward.1} parent=11 // pred_check
        %p518 = pneg %p314
      $region50: #{hourglass_2_forward.1} parent=11 // pred_check_branch
        %520 = sbr.rel (%p518) target = $region52
      $region51: #{hourglass_2_forward.1} parent=11 // pred_region
        _
      $region52: #{hourglass_2_forward.1} parent=11 // pred_fallthru
        _
      // Predicated region
      $region53: #{hourglass_2_forward.1} parent=11 // pred_check
        %p521 = pneg %p335
      $region54: #{hourglass_2_forward.1} parent=11 // pred_check_branch
        %523 = sbr.rel (%p521) target = $region56
      $region55: #{hourglass_2_forward.1} parent=11 // pred_region
        _
      $region56: #{hourglass_2_forward.1} parent=11 // pred_fallthru
        _
      // Predicated region
      $region57: #{hourglass_2_forward.1} parent=11 // pred_check
        %p524 = pneg %p356
      $region58: #{hourglass_2_forward.1} parent=11 // pred_check_branch
        %526 = sbr.rel (%p524) target = $region60
      $region59: #{hourglass_2_forward.1} parent=11 // pred_region
        _
      $region60: #{hourglass_2_forward.1} parent=11 // pred_fallthru
        _
      // Predicated region
      $region61: #{hourglass_2_forward.1} parent=11 // pred_check
        %p527 = pneg %p377
      $region62: #{hourglass_2_forward.1} parent=11 // pred_check_branch
        %529 = sbr.rel (%p527) target = $region64
      $region63: #{hourglass_2_forward.1} parent=11 // pred_region
        _
      $region64: #{hourglass_2_forward.1} parent=11 // pred_fallthru
        _
      // Predicated region
      $region65: #{hourglass_2_forward.1} parent=11 // pred_check
        %p530 = pneg %p398
      $region66: #{hourglass_2_forward.1} parent=11 // pred_check_branch
        %532 = sbr.rel (%p530) target = $region68
      $region67: #{hourglass_2_forward.1} parent=11 // pred_region
        _
      $region68: #{hourglass_2_forward.1} parent=11 // pred_fallthru
        _
    $region12: #{hourglass_2_forward.1} parent=5 // pred_fallthru
      _
    %p533 = scmp.lt.s32.totalorder %s26, 2
    // Predicated region
    $region69: #{hourglass_2_forward.1} parent=5 // pred_check
      %p534 = pneg %p533
    $region70: #{hourglass_2_forward.1} parent=5 // pred_check_branch
      %536 = sbr.rel (%p534) target = $region72
    $region71: #{hourglass_2_forward.1} parent=5 // pred_region
      // Predicated region
      $region73: #{hourglass_2_forward.1} parent=71 // pred_check
        %p537 = pneg %p46
      $region74: #{hourglass_2_forward.1} parent=71 // pred_check_branch
        %539 = sbr.rel (%p537) target = $region76
      $region75: #{hourglass_2_forward.1} parent=71 // pred_region
        %p540 = scmp.lt.s32.totalorder %s26, 1
        %s541 = scalar_select %p540, %s26, 1
        %s542 = smul.addr %s541, 3
        %s543 = smul.addr %s542, 2
        %s544 = scalar_lea.vmem %s0, %s543
      $region76: #{hourglass_2_forward.1} parent=71 // pred_fallthru
        _
      // Predicated region
      $region77: #{hourglass_2_forward.1} parent=71 // pred_check
        %p545 = pneg %p72
      $region78: #{hourglass_2_forward.1} parent=71 // pred_check_branch
        %547 = sbr.rel (%p545) target = $region80
      $region79: #{hourglass_2_forward.1} parent=71 // pred_region
        %p548 = scmp.lt.s32.totalorder %s26, 1
        %s549 = scalar_select %p548, %s26, 1
        %s550 = smul.addr %s549, 8
        %s551 = scalar_lea.vmem %s1, %s550
      $region80: #{hourglass_2_forward.1} parent=71 // pred_fallthru
        _
      // Predicated region
      $region81: #{hourglass_2_forward.1} parent=71 // pred_check
        %p552 = pneg %p98
      $region82: #{hourglass_2_forward.1} parent=71 // pred_check_branch
        %554 = sbr.rel (%p552) target = $region84
      $region83: #{hourglass_2_forward.1} parent=71 // pred_region
        %p555 = scmp.lt.s32.totalorder %s26, 1
        %s556 = scalar_select %p555, %s26, 1
        %s557 = smul.addr %s556, 2
        %s558 = smul.addr %s557, 8
        %s559 = scalar_lea.vmem %s2, %s558
      $region84: #{hourglass_2_forward.1} parent=71 // pred_fallthru
        _
    $region72: #{hourglass_2_forward.1} parent=5 // pred_fallthru
      _
    %p560 = scmp.le.s32.totalorder 1, %s26
    %p561 = scmp.lt.s32.totalorder %s26, 3
    %p562 = pnand %p560, %p561
    %p563 = pneg %p562
    // Predicated region
    $region85: #{hourglass_2_forward.1} parent=5 // pred_check
      _
    $region86: #{hourglass_2_forward.1} parent=5 // pred_check_branch
      %565 = sbr.rel (%p562) target = $region88
    $region87: #{hourglass_2_forward.1} parent=5 // pred_region
      %s566 = ssub.s32 %s26, 1
      %p567 = scmp.lt.s32.totalorder %s31, 1
      %s568 = scalar_select %p567, %s31, 1
      %s569 = smul.addr %s568, 3
      %s570 = smul.addr %s569, 2
      %s571 = scalar_lea.vmem %s0, %s570
      %p572 = pneg %p52
      %p573 = pneg %p49
      %p574 = scmp.lt.s32.totalorder %s31, 1
      %s575 = scalar_select %p574, %s31, 1
      %s576 = smul.addr %s575, 8
      %s577 = scalar_lea.vmem %s1, %s576
      %p578 = pneg %p78
      %p579 = pneg %p75
      %p580 = scmp.lt.s32.totalorder %s31, 1
      %s581 = scalar_select %p580, %s31, 1
      %s582 = smul.addr %s581, 2
      %s583 = smul.addr %s582, 8
      %s584 = scalar_lea.vmem %s2, %s583
      %p585 = pneg %p104
      %p586 = pneg %p101
      %p587 = pneg %p125
      %p588 = pneg %p122
      %p589 = pneg %p146
      %p590 = pneg %p143
      %p591 = pneg %p167
      %p592 = pneg %p164
      %p593 = pneg %p188
      %p594 = pneg %p185
      %p595 = pneg %p209
      %p596 = pneg %p206
      %p597 = pneg %p230
      %p598 = pneg %p227
      %p599 = pneg %p251
      %p600 = pneg %p248
      %p601 = pneg %p272
      %p602 = pneg %p269
      %p603 = pneg %p293
      %p604 = pneg %p290
      %p605 = pneg %p314
      %p606 = pneg %p311
      %p607 = pneg %p335
      %p608 = pneg %p332
      %p609 = pneg %p356
      %p610 = pneg %p353
      %p611 = pneg %p377
      %p612 = pneg %p374
      %p613 = pneg %p398
      %p614 = pneg %p395
      %p615 = pneg %p424
      %p616 = pneg %p421
      %p617 = scmp.lt.s32.totalorder %s31, 1
      %s618 = scalar_select %p617, %s31, 1
      %s619 = smul.addr %s618, 2
      %s620 = smul.addr %s619, 4
      %s621 = scalar_lea.vmem %s17, %s620
      %p622 = pneg %p450
      %p623 = pneg %p447
      %p624 = scmp.lt.s32.totalorder %s31, 1
      %s625 = scalar_select %p624, %s31, 1
      %s626 = smul.addr %s625, 8
      %s627 = scalar_lea.vmem %s18, %s626
      %p628 = pneg %p476
      %p629 = pneg %p473
      %p630 = scmp.lt.s32.totalorder %s31, 1
      %s631 = scalar_select %p630, %s31, 1
      %s632 = smul.addr %s631, 2
      %s633 = smul.addr %s632, 8
      %s634 = scalar_lea.vmem %s19, %s633
      %p635 = scmp.lt.s32.totalorder %s31, 1
      %s636 = scalar_select %p635, %s31, 1
      %s637 = smul.addr %s636, 3
      %s638 = smul.addr %s637, 2
      %s639 = scalar_lea.vmem %s0, %s638
      %p640 = scmp.lt.s32.totalorder %s31, 1
      %s641 = scalar_select %p640, %s31, 1
      %s642 = smul.addr %s641, 8
      %s643 = scalar_lea.vmem %s1, %s642
      %p644 = scmp.lt.s32.totalorder %s31, 1
      %s645 = scalar_select %p644, %s31, 1
      %s646 = smul.addr %s645, 2
      %s647 = smul.addr %s646, 8
      %s648 = scalar_lea.vmem %s2, %s647
      %p649 = scmp.lt.s32.totalorder %s31, 1
      %s650 = scalar_select %p649, %s31, 1
      %s651 = smul.addr %s650, 2
      %s652 = smul.addr %s651, 4
      %s653 = scalar_lea.vmem %s17, %s652
      %p654 = scmp.lt.s32.totalorder %s31, 1
      %s655 = scalar_select %p654, %s31, 1
      %s656 = smul.addr %s655, 8
      %s657 = scalar_lea.vmem %s18, %s656
      %p658 = scmp.lt.s32.totalorder %s31, 1
      %s659 = scalar_select %p658, %s31, 1
      %s660 = smul.addr %s659, 2
      %s661 = smul.addr %s660, 8
      %s662 = scalar_lea.vmem %s19, %s661
      %v664 = vld [vmem:[%s3] sm:$0xf]
      %v665 = vld [vmem:[%s639] sm:$0x3f]
      %v667 = vcombine.high %v665, %v665
      %v669 = vunpack.c.l.s4 1983009808
      %v670 = vunpack.c.0.s8 %v669
      %v671 = vlaneseq
      %v672 = vshrl.u32 %v671, 7
      %v673 = vsub.s32 %v670, %v672
      %v674 = vrot.slane %v665, %v673
      %v676 = vunpack.c.l.s4 1983009808
      %v677 = vunpack.c.0.s8 %v676
      %v678 = vlaneseq
      %v679 = vshrl.u32 %v678, 7
      %v680 = vsub.s32 %v677, %v679
      %v681 = vrot.slane %v667, %v680
      %v682 = vcombine.high %v674, %v674
      %v683 = vcombine.low %v665, %v665
      %v685 = vunpack.c.l.s4 1983009808
      %v686 = vunpack.c.0.s8 %v685
      %v687 = vlaneseq
      %v688 = vshrl.u32 %v687, 7
      %v689 = vsub.s32 %v686, %v688
      %v690 = vrot.slane %v683, %v689
      %v691 = vcombine.high %v690, %v690
      %692 = vrot.lane.b32.xlu0 %v690, 127
      %v693 = vpop.permute.xlu0 %692
      %694 = vrot.lane.b32.xlu0 %v691, 127
      %v695 = vpop.permute.xlu0 %694
      %696 = vrot.lane.b32.xlu0 %v674, 127
      %v697 = vpop.permute.xlu0 %696
      %vm698 = vcmask 1039360
      %v699 = vsel %vm698, %v693, %v695
      %v700 = vsel %vm698, %v695, %v697
      %v701 = vcombine.low %v674, %v674
      %v702 = vcombine.low %v681, %v681
      %703 = vrot.lane.b32.xlu0 %v701, 126
      %v704 = vpop.permute.xlu0 %703
      %705 = vrot.lane.b32.xlu0 %v674, 126
      %v706 = vpop.permute.xlu0 %705
      %707 = vrot.lane.b32.xlu0 %v702, 126
      %v708 = vpop.permute.xlu0 %707
      %vm709 = vcmask 1031168
      %v710 = vsel %vm709, %v704, %v706
      %v711 = vsel %vm709, %v706, %v708
      %v712 = vcombine.low %v690, %v690
      %713 = vrot.lane.b32.xlu0 %v712, 110
      %v714 = vpop.permute.xlu0 %713
      %715 = vrot.lane.b32.xlu0 %v690, 110
      %v716 = vpop.permute.xlu0 %715
      %717 = vrot.lane.b32.xlu0 %v701, 110
      %v718 = vpop.permute.xlu0 %717
      %vm719 = vcmask 900096
      %v720 = vsel %vm719, %v714, %v716
      %v721 = vsel %vm719, %v716, %v718
      %722 = vrot.lane.b32.xlu0 %v674, 109
      %v723 = vpop.permute.xlu0 %722
      %724 = vrot.lane.b32.xlu0 %v682, 109
      %v725 = vpop.permute.xlu0 %724
      %726 = vrot.lane.b32.xlu0 %v681, 109
      %v727 = vpop.permute.xlu0 %726
      %vm728 = vcmask 891904
      %v729 = vsel %vm728, %v723, %v725
      %v730 = vsel %vm728, %v725, %v727
      %731 = vrot.lane.b32.xlu0 %v690, 108
      %v732 = vpop.permute.xlu0 %731
      %733 = vrot.lane.b32.xlu0 %v691, 108
      %v734 = vpop.permute.xlu0 %733
      %735 = vrot.lane.b32.xlu0 %v674, 108
      %v736 = vpop.permute.xlu0 %735
      %vm737 = vcmask 883712
      %v738 = vsel %vm737, %v732, %v734
      %v739 = vsel %vm737, %v734, %v736
      %740 = vrot.lane.b32.xlu0 %v701, 92
      %v741 = vpop.permute.xlu0 %740
      %742 = vrot.lane.b32.xlu0 %v674, 92
      %v743 = vpop.permute.xlu0 %742
      %744 = vrot.lane.b32.xlu0 %v702, 92
      %v745 = vpop.permute.xlu0 %744
      %vm746 = vcmask 752640
      %v747 = vsel %vm746, %v741, %v743
      %v748 = vsel %vm746, %v743, %v745
      %749 = vrot.lane.b32.xlu0 %v712, 91
      %v750 = vpop.permute.xlu0 %749
      %751 = vrot.lane.b32.xlu0 %v690, 91
      %v752 = vpop.permute.xlu0 %751
      %753 = vrot.lane.b32.xlu0 %v701, 91
      %v754 = vpop.permute.xlu0 %753
      %vm755 = vcmask 744448
      %v756 = vsel %vm755, %v750, %v752
      %v757 = vsel %vm755, %v752, %v754
      %758 = vrot.lane.b32.xlu0 %v674, 90
      %v759 = vpop.permute.xlu0 %758
      %760 = vrot.lane.b32.xlu0 %v682, 90
      %v761 = vpop.permute.xlu0 %760
      %762 = vrot.lane.b32.xlu0 %v681, 90
      %v763 = vpop.permute.xlu0 %762
      %vm764 = vcmask 736256
      %v765 = vsel %vm764, %v759, %v761
      %v766 = vsel %vm764, %v761, %v763
      %vm767 = vcmask 1041408
      %v770 = vsel %vm767, %v674, %v699
      %v773 = vsel %vm767, %v682, %v700
      %v776 = vsel %vm767, %v681, %v697
      %vm777 = vcmask 1043456
      %v779 = vsel %vm777, %v770, %v710
      %v781 = vsel %vm777, %v773, %v711
      %v783 = vsel %vm777, %v776, %v708
      %vm784 = vcmask 1045504
      %v786 = vsel %vm784, %v779, %v720
      %v789 = vsel %vm784, %v781, %v721
      %v792 = vsel %vm784, %v783, %v718
      %v796 = vsel %vm767, %v729, %v738
      %v799 = vsel %vm767, %v730, %v739
      %v802 = vsel %vm767, %v727, %v736
      %v804 = vsel %vm777, %v796, %v747
      %v806 = vsel %vm777, %v799, %v748
      %v808 = vsel %vm777, %v802, %v745
      %v810 = vsel %vm784, %v804, %v756
      %v813 = vsel %vm784, %v806, %v757
      %v816 = vsel %vm784, %v808, %v754
      %vm818 = vcmask 293888
      %v820 = vsel %vm818, %v664, 0
      %v823 = vsel %vm767, %v765, 0
      %v826 = vsel %vm767, %v766, 0
      %v829 = vsel %vm767, %v763, 0
      %831 = vmatprep.subr.bf16.mxu0 %v789
      %832 = vmatpush1.bf16.msra.mxu0 %v786
      %833 = vmatprep.subr.bf16.mxu0 %v813
      %834 = vmatpush1.bf16.msra.mxu0 %v810
      %835 = vmatprep.subr.bf16.mxu0 %v826
      %836 = vmatpush1.bf16.msra.mxu0 %v823
      %837 = vmatprep.subr.bf16.mxu0 0
      %838 = vmatpush1.bf16.msra.mxu0 0
      %839 = vmatprep.subr.bf16.mxu0 0
      %840 = vmatpush1.bf16.msra.mxu0 0
      %841 = vmatprep.subr.bf16.mxu0 0
      %842 = vmatpush1.bf16.msra.mxu0 0
      %843 = vmatprep.subr.bf16.mxu0 0
      %844 = vmatpush1.bf16.msra.mxu0 0
      %845 = vmatprep.subr.bf16.mxu0 0
      %846 = vmatpush1.bf16.msra.mxu0 0
      %847 = vmatprep.subr.bf16.mxu0 0
      %848 = vmatpush1.bf16.msra.mxu0 0
      %849 = vmatprep.subr.bf16.mxu0 0
      %850 = vmatpush1.bf16.msra.mxu0 0
      %851 = vmatprep.subr.bf16.mxu0 0
      %852 = vmatpush1.bf16.msra.mxu0 0
      %853 = vmatprep.subr.bf16.mxu0 0
      %854 = vmatpush1.bf16.msra.mxu0 0
      %855 = vmatprep.subr.bf16.mxu0 0
      %856 = vmatpush1.bf16.msra.mxu0 0
      %857 = vmatprep.subr.bf16.mxu0 0
      %858 = vmatpush1.bf16.msra.mxu0 0
      %859 = vmatprep.subr.bf16.mxu0 0
      %860 = vmatpush1.bf16.msra.mxu0 0
      %861 = vmatprep.subr.bf16.mxu0 0
      %862 = vmatpush1.bf16.msra.mxu0 0
      %863 = vmatprep.mubr.bf16.mxu0 0
      %864 = vmatmul.mubr.bf16.gmra.mrb[0].mxu0 %v820
      %v865 = vpop.f32.mrb[0].mxu0
      %v866 = vadd.f32 0.0, %v865
      %v867 = vpop.f32.mrb[0].mxu0
      %v868 = vadd.f32 0.0, %v867
      %v869 = vpop.f32.mrb[0].mxu0
      %v870 = vpop.f32.mrb[0].mxu0
      %871 = vdwg.mxu0
      %872 = vmatprep.subr.bf16.mxu0 0
      %873 = vmatpush1.bf16.msra.mxu0 %v792
      %874 = vmatprep.subr.bf16.mxu0 0
      %875 = vmatpush1.bf16.msra.mxu0 %v816
      %876 = vmatprep.subr.bf16.mxu0 0
      %877 = vmatpush1.bf16.msra.mxu0 %v829
      %878 = vmatprep.subr.bf16.mxu0 0
      %879 = vmatpush1.bf16.msra.mxu0 0
      %880 = vmatprep.subr.bf16.mxu0 0
      %881 = vmatpush1.bf16.msra.mxu0 0
      %882 = vmatprep.subr.bf16.mxu0 0
      %883 = vmatpush1.bf16.msra.mxu0 0
      %884 = vmatprep.subr.bf16.mxu0 0
      %885 = vmatpush1.bf16.msra.mxu0 0
      %886 = vmatprep.subr.bf16.mxu0 0
      %887 = vmatpush1.bf16.msra.mxu0 0
      %888 = vmatprep.subr.bf16.mxu0 0
      %889 = vmatpush1.bf16.msra.mxu0 0
      %890 = vmatprep.subr.bf16.mxu0 0
      %891 = vmatpush1.bf16.msra.mxu0 0
      %892 = vmatprep.subr.bf16.mxu0 0
      %893 = vmatpush1.bf16.msra.mxu0 0
      %894 = vmatprep.subr.bf16.mxu0 0
      %895 = vmatpush1.bf16.msra.mxu0 0
      %896 = vmatprep.subr.bf16.mxu0 0
      %897 = vmatpush1.bf16.msra.mxu0 0
      %898 = vmatprep.subr.bf16.mxu0 0
      %899 = vmatpush1.bf16.msra.mxu0 0
      %900 = vmatprep.subr.bf16.mxu0 0
      %901 = vmatpush1.bf16.msra.mxu0 0
      %902 = vmatprep.subr.bf16.mxu0 0
      %903 = vmatpush1.bf16.msra.mxu0 0
      %904 = vmatprep.mubr.bf16.mxu0 0
      %905 = vmatmul.mubr.bf16.gmra.mrb[0].mxu0 %v820
      %v906 = vpop.f32.mrb[0].mxu0
      %v907 = vadd.f32 0.0, %v906
      %v908 = vpop.f32.mrb[0].mxu0
      %v909 = vpop.f32.mrb[0].mxu0
      %v910 = vpop.f32.mrb[0].mxu0
      %911 = vdwg.mxu0
      %v912 = vld [vmem:[%s9] sm:$0xff]
      %v913 = vld [vmem:[%s9 + $0x8] sm:$0xff]
      %v914 = vld [vmem:[%s9 + $0x10] sm:$0xff]
      %v915 = vld [vmem:[%s9 + $0x18] sm:$0xff]
      %v916 = vld [vmem:[%s9 + $0x20] sm:$0xff]
      %v917 = vld [vmem:[%s9 + $0x28] sm:$0xff]
      %v918 = vld [vmem:[%s9 + $0x30] sm:$0xff]
      %v919 = vld [vmem:[%s9 + $0x38] sm:$0xff]
      %v920 = vld [vmem:[%s9 + $0x40] sm:$0xff]
      %v921 = vld [vmem:[%s9 + $0x48] sm:$0xff]
      %v922 = vld [vmem:[%s9 + $0x50] sm:$0xff]
      %v923 = vld [vmem:[%s9 + $0x58] sm:$0xff]
      %v924 = vld [vmem:[%s9 + $0x60] sm:$0xff]
      %v925 = vld [vmem:[%s9 + $0x68] sm:$0xff]
      %v926 = vld [vmem:[%s9 + $0x70] sm:$0xff]
      %v927 = vld [vmem:[%s9 + $0x78] sm:$0xff]
      %v928 = vld [vmem:[%s9 + $0x80] sm:$0xff]
      %v929 = vld [vmem:[%s9 + $0x88] sm:$0xff]
      %v930 = vld [vmem:[%s9 + $0x90] sm:$0xff]
      %v931 = vld [vmem:[%s9 + $0x98] sm:$0xff]
      %v932 = vld [vmem:[%s9 + $0xa0] sm:$0xff]
      %v933 = vld [vmem:[%s9 + $0xa8] sm:$0xff]
      %v934 = vld [vmem:[%s9 + $0xb0] sm:$0xff]
      %v935 = vld [vmem:[%s9 + $0xb8] sm:$0xff]
      %v936 = vld [vmem:[%s9 + $0xc0] sm:$0xff]
      %v937 = vld [vmem:[%s9 + $0xc8] sm:$0xff]
      %v938 = vld [vmem:[%s9 + $0xd0] sm:$0xff]
      %v939 = vld [vmem:[%s9 + $0xd8] sm:$0xff]
      %v940 = vld [vmem:[%s9 + $0xe0] sm:$0xff]
      %v941 = vld [vmem:[%s9 + $0xe8] sm:$0xff]
      %v942 = vld [vmem:[%s9 + $0xf0] sm:$0xff]
      %v943 = vld [vmem:[%s9 + $0xf8] sm:$0xff]
      %v944 = vld [vmem:[%s9 + $0x100] sm:$0xff]
      %v945 = vld [vmem:[%s9 + $0x108] sm:$0xff]
      %v946 = vld [vmem:[%s9 + $0x110] sm:$0xff]
      %v947 = vld [vmem:[%s9 + $0x118] sm:$0x3f]
      %vm948 = vcmask 244736
      %v950 = vsel %vm948, %v907, 0
      %v953 = vsel %vm784, %v947, 0
      %955 = vmatprep.subr.mxu0 0.0
      %956 = vmatpush1.msra.mxu0 %v912
      %957 = vmatprep.subr.mxu0 0.0
      %958 = vmatpush1.msra.mxu0 %v913
      %959 = vmatprep.subr.mxu0 0.0
      %960 = vmatpush1.msra.mxu0 %v914
      %961 = vmatprep.subr.mxu0 0.0
      %962 = vmatpush1.msra.mxu0 %v915
      %963 = vmatprep.subr.mxu0 0.0
      %964 = vmatpush1.msra.mxu0 %v916
      %965 = vmatprep.subr.mxu0 0.0
      %966 = vmatpush1.msra.mxu0 %v917
      %967 = vmatprep.subr.mxu0 0.0
      %968 = vmatpush1.msra.mxu0 %v918
      %969 = vmatprep.subr.mxu0 0.0
      %970 = vmatpush1.msra.mxu0 %v919
      %971 = vmatprep.subr.mxu0 0.0
      %972 = vmatpush1.msra.mxu0 %v920
      %973 = vmatprep.subr.mxu0 0.0
      %974 = vmatpush1.msra.mxu0 %v921
      %975 = vmatprep.subr.mxu0 0.0
      %976 = vmatpush1.msra.mxu0 %v922
      %977 = vmatprep.subr.mxu0 0.0
      %978 = vmatpush1.msra.mxu0 %v923
      %979 = vmatprep.subr.mxu0 0.0
      %980 = vmatpush1.msra.mxu0 %v924
      %981 = vmatprep.subr.mxu0 0.0
      %982 = vmatpush1.msra.mxu0 %v925
      %983 = vmatprep.subr.mxu0 0.0
      %984 = vmatpush1.msra.mxu0 %v926
      %985 = vmatprep.subr.mxu0 0.0
      %986 = vmatpush1.msra.mxu0 %v927
      %987 = vmatprep.subr.mxu0 0.0
      %988 = vmatpush1.msra.mxu0 %v928
      %989 = vmatprep.subr.mxu0 0.0
      %990 = vmatpush1.msra.mxu0 %v929
      %991 = vmatprep.subr.mxu0 0.0
      %992 = vmatpush1.msra.mxu0 %v930
      %993 = vmatprep.subr.mxu0 0.0
      %994 = vmatpush1.msra.mxu0 %v931
      %995 = vmatprep.subr.mxu0 0.0
      %996 = vmatpush1.msra.mxu0 %v932
      %997 = vmatprep.subr.mxu0 0.0
      %998 = vmatpush1.msra.mxu0 %v933
      %999 = vmatprep.subr.mxu0 0.0
      %1000 = vmatpush1.msra.mxu0 %v934
      %1001 = vmatprep.subr.mxu0 0.0
      %1002 = vmatpush1.msra.mxu0 %v935
      %1003 = vmatprep.subr.mxu0 0.0
      %1004 = vmatpush1.msra.mxu0 %v936
      %1005 = vmatprep.subr.mxu0 0.0
      %1006 = vmatpush1.msra.mxu0 %v937
      %1007 = vmatprep.subr.mxu0 0.0
      %1008 = vmatpush1.msra.mxu0 %v938
      %1009 = vmatprep.subr.mxu0 0.0
      %1010 = vmatpush1.msra.mxu0 %v939
      %1011 = vmatprep.subr.mxu0 0.0
      %1012 = vmatpush1.msra.mxu0 %v940
      %1013 = vmatprep.subr.mxu0 0.0
      %1014 = vmatpush1.msra.mxu0 %v941
      %1015 = vmatprep.subr.mxu0 0.0
      %1016 = vmatpush1.msra.mxu0 %v942
      %1017 = vmatprep.subr.mxu0 0.0
      %1018 = vmatpush1.msra.mxu0 %v943
      %1019 = vmatprep.mubr.f32.mxu0 %v868
      %1020 = vmatmul.mubr.f32.gmra.mrb[0].mxu0 %v866
      %v1021 = vpop.f32.mrb[0].mxu0
      %v1022 = vadd.f32 0.0, %v1021
      %v1023 = vpop.f32.mrb[0].mxu0
      %1024 = vdwg.mxu0
      %1025 = vmatprep.subr.mxu0 0.0
      %1026 = vmatpush1.msra.mxu0 %v944
      %1027 = vmatprep.subr.mxu0 0.0
      %1028 = vmatpush1.msra.mxu0 %v945
      %1029 = vmatprep.subr.mxu0 0.0
      %1030 = vmatpush1.msra.mxu0 %v946
      %1031 = vmatprep.subr.mxu0 0.0
      %1032 = vmatpush1.msra.mxu0 %v953
      %1033 = vmatprep.subr.mxu0 0.0
      %1034 = vmatpush1.msra.mxu0 0.0
      %1035 = vmatprep.subr.mxu0 0.0
      %1036 = vmatpush1.msra.mxu0 0.0
      %1037 = vmatprep.subr.mxu0 0.0
      %1038 = vmatpush1.msra.mxu0 0.0
      %1039 = vmatprep.subr.mxu0 0.0
      %1040 = vmatpush1.msra.mxu0 0.0
      %1041 = vmatprep.subr.mxu0 0.0
      %1042 = vmatpush1.msra.mxu0 0.0
      %1043 = vmatprep.subr.mxu0 0.0
      %1044 = vmatpush1.msra.mxu0 0.0
      %1045 = vmatprep.subr.mxu0 0.0
      %1046 = vmatpush1.msra.mxu0 0.0
      %1047 = vmatprep.subr.mxu0 0.0
      %1048 = vmatpush1.msra.mxu0 0.0
      %1049 = vmatprep.subr.mxu0 0.0
      %1050 = vmatpush1.msra.mxu0 0.0
      %1051 = vmatprep.subr.mxu0 0.0
      %1052 = vmatpush1.msra.mxu0 0.0
      %1053 = vmatprep.subr.mxu0 0.0
      %1054 = vmatpush1.msra.mxu0 0.0
      %1055 = vmatprep.subr.mxu0 0.0
      %1056 = vmatpush1.msra.mxu0 0.0
      %1057 = vmatprep.subr.mxu0 0.0
      %1058 = vmatpush1.msra.mxu0 0.0
      %1059 = vmatprep.subr.mxu0 0.0
      %1060 = vmatpush1.msra.mxu0 0.0
      %1061 = vmatprep.subr.mxu0 0.0
      %1062 = vmatpush1.msra.mxu0 0.0
      %1063 = vmatprep.subr.mxu0 0.0
      %1064 = vmatpush1.msra.mxu0 0.0
      %1065 = vmatprep.subr.mxu0 0.0
      %1066 = vmatpush1.msra.mxu0 0.0
      %1067 = vmatprep.subr.mxu0 0.0
      %1068 = vmatpush1.msra.mxu0 0.0
      %1069 = vmatprep.subr.mxu0 0.0
      %1070 = vmatpush1.msra.mxu0 0.0
      %1071 = vmatprep.subr.mxu0 0.0
      %1072 = vmatpush1.msra.mxu0 0.0
      %1073 = vmatprep.subr.mxu0 0.0
      %1074 = vmatpush1.msra.mxu0 0.0
      %1075 = vmatprep.subr.mxu0 0.0
      %1076 = vmatpush1.msra.mxu0 0.0
      %1077 = vmatprep.subr.mxu0 0.0
      %1078 = vmatpush1.msra.mxu0 0.0
      %1079 = vmatprep.subr.mxu0 0.0
      %1080 = vmatpush1.msra.mxu0 0.0
      %1081 = vmatprep.subr.mxu0 0.0
      %1082 = vmatpush1.msra.mxu0 0.0
      %1083 = vmatprep.subr.mxu0 0.0
      %1084 = vmatpush1.msra.mxu0 0.0
      %1085 = vmatprep.subr.mxu0 0.0
      %1086 = vmatpush1.msra.mxu0 0.0
      %1087 = vmatprep.subr.mxu0 0.0
      %1088 = vmatpush1.msra.mxu0 0.0
      %1089 = vmatprep.mubr.f32.mxu0 0.0
      %1090 = vmatmul.mubr.f32.gmra.mrb[0].mxu0 %v950
      %v1091 = vpop.f32.mrb[0].mxu0
      %v1092 = vadd.f32 %v1022, %v1091
      %v1093 = vpop.f32.mrb[0].mxu0
      %1094 = vdwg.mxu0
      %v1095 = vmax.f32 %v1092, 0.0
      %v1096 = vld [vmem:[%s4] sm:$0xf]
      %v1097 = vpack.c.bf16 %v1095, %v1095
      %v1099 = vrot.slane %v1097, 4
      %1100 = vrot.lane.b32.xlu0 %v1099, 127
      %v1101 = vpop.permute.xlu0 %1100
      %1102 = vrot.lane.b32.xlu0 %v1097, 126
      %v1103 = vpop.permute.xlu0 %1102
      %1104 = vrot.lane.b32.xlu0 %v1099, 118
      %v1105 = vpop.permute.xlu0 %1104
      %1106 = vrot.lane.b32.xlu0 %v1097, 117
      %v1107 = vpop.permute.xlu0 %1106
      %1108 = vrot.lane.b32.xlu0 %v1099, 116
      %v1109 = vpop.permute.xlu0 %1108
      %1110 = vrot.lane.b32.xlu0 %v1097, 108
      %v1111 = vpop.permute.xlu0 %1110
      %1112 = vrot.lane.b32.xlu0 %v1099, 107
      %v1113 = vpop.permute.xlu0 %1112
      %1114 = vrot.lane.b32.xlu0 %v1097, 106
      %v1115 = vpop.permute.xlu0 %1114
      %v1118 = vsel %vm777, %v1097, %v1101
      %v1122 = vsel %vm777, %v1103, %v1105
      %v1126 = vsel %vm777, %v1107, %v1109
      %v1130 = vsel %vm777, %v1111, %v1113
      %v1132 = vld [vmem:[%s643] sm:$0xff]
      %1134 = vrot.lane.b32.xlu0 %v1132, 117
      %v1135 = vpop.permute.xlu0 %1134
      %vm1137 = vcmask 588800
      %v1139 = vsel %vm1137, %v1096, 0
      %v1142 = vsel %vm777, %v1115, 0
      %1144 = vmatprep.subr.bf16.mxu0 0
      %1145 = vmatpush1.bf16.msra.mxu0 %v1118
      %1146 = vmatprep.subr.bf16.mxu0 0
      %1147 = vmatpush1.bf16.msra.mxu0 %v1122
      %1148 = vmatprep.subr.bf16.mxu0 0
      %1149 = vmatpush1.bf16.msra.mxu0 %v1126
      %1150 = vmatprep.subr.bf16.mxu0 0
      %1151 = vmatpush1.bf16.msra.mxu0 %v1130
      %1152 = vmatprep.subr.bf16.mxu0 0
      %1153 = vmatpush1.bf16.msra.mxu0 %v1142
      %1154 = vmatprep.subr.bf16.mxu0 0
      %1155 = vmatpush1.bf16.msra.mxu0 0
      %1156 = vmatprep.subr.bf16.mxu0 0
      %1157 = vmatpush1.bf16.msra.mxu0 0
      %1158 = vmatprep.subr.bf16.mxu0 0
      %1159 = vmatpush1.bf16.msra.mxu0 0
      %1160 = vmatprep.subr.bf16.mxu0 0
      %1161 = vmatpush1.bf16.msra.mxu0 0
      %1162 = vmatprep.subr.bf16.mxu0 0
      %1163 = vmatpush1.bf16.msra.mxu0 0
      %1164 = vmatprep.subr.bf16.mxu0 0
      %1165 = vmatpush1.bf16.msra.mxu0 0
      %1166 = vmatprep.subr.bf16.mxu0 0
      %1167 = vmatpush1.bf16.msra.mxu0 0
      %1168 = vmatprep.subr.bf16.mxu0 0
      %1169 = vmatpush1.bf16.msra.mxu0 0
      %1170 = vmatprep.subr.bf16.mxu0 0
      %1171 = vmatpush1.bf16.msra.mxu0 0
      %1172 = vmatprep.subr.bf16.mxu0 0
      %1173 = vmatpush1.bf16.msra.mxu0 0
      %1174 = vmatprep.subr.bf16.mxu0 0
      %1175 = vmatpush1.bf16.msra.mxu0 0
      %1176 = vmatprep.mubr.bf16.mxu0 0
      %1177 = vmatmul.mubr.bf16.gmra.mrb[0].mxu0 %v1139
      %v1178 = vpop.f32.mrb[0].mxu0
      %v1179 = vadd.f32 %v1135, %v1178
      %v1180 = vpop.f32.mrb[0].mxu0
      %v1181 = vpop.f32.mrb[0].mxu0
      %v1182 = vpop.f32.mrb[0].mxu0
      %1183 = vdwg.mxu0
      %v1184 = vmax.f32 %v1179, 0.0
      %v1185 = vld [vmem:[%s11] sm:$0xff]
      %v1186 = vld [vmem:[%s11 + $0x8] sm:$0xff]
      %v1187 = vld [vmem:[%s11 + $0x10] sm:$0xff]
      %v1188 = vld [vmem:[%s11 + $0x18] sm:$0xff]
      %v1189 = vld [vmem:[%s11 + $0x20] sm:$0xff]
      %v1190 = vld [vmem:[%s11 + $0x28] sm:$0xff]
      %v1191 = vld [vmem:[%s11 + $0x30] sm:$0xff]
      %v1192 = vld [vmem:[%s11 + $0x38] sm:$0xff]
      %v1193 = vld [vmem:[%s11 + $0x40] sm:$0xff]
      %v1194 = vld [vmem:[%s11 + $0x48] sm:$0x3f]
      %vm1195 = vcmask 637952
      %v1197 = vsel %vm1195, %v1184, 0
      %v1200 = vsel %vm784, %v1194, 0
      %1202 = vmatprep.subr.mxu0 0.0
      %1203 = vmatpush1.msra.mxu0 %v1185
      %1204 = vmatprep.subr.mxu0 0.0
      %1205 = vmatpush1.msra.mxu0 %v1186
      %1206 = vmatprep.subr.mxu0 0.0
      %1207 = vmatpush1.msra.mxu0 %v1187
      %1208 = vmatprep.subr.mxu0 0.0
      %1209 = vmatpush1.msra.mxu0 %v1188
      %1210 = vmatprep.subr.mxu0 0.0
      %1211 = vmatpush1.msra.mxu0 %v1189
      %1212 = vmatprep.subr.mxu0 0.0
      %1213 = vmatpush1.msra.mxu0 %v1190
      %1214 = vmatprep.subr.mxu0 0.0
      %1215 = vmatpush1.msra.mxu0 %v1191
      %1216 = vmatprep.subr.mxu0 0.0
      %1217 = vmatpush1.msra.mxu0 %v1192
      %1218 = vmatprep.subr.mxu0 0.0
      %1219 = vmatpush1.msra.mxu0 %v1193
      %1220 = vmatprep.subr.mxu0 0.0
      %1221 = vmatpush1.msra.mxu0 %v1200
      %1222 = vmatprep.subr.mxu0 0.0
      %1223 = vmatpush1.msra.mxu0 0.0
      %1224 = vmatprep.subr.mxu0 0.0
      %1225 = vmatpush1.msra.mxu0 0.0
      %1226 = vmatprep.subr.mxu0 0.0
      %1227 = vmatpush1.msra.mxu0 0.0
      %1228 = vmatprep.subr.mxu0 0.0
      %1229 = vmatpush1.msra.mxu0 0.0
      %1230 = vmatprep.subr.mxu0 0.0
      %1231 = vmatpush1.msra.mxu0 0.0
      %1232 = vmatprep.subr.mxu0 0.0
      %1233 = vmatpush1.msra.mxu0 0.0
      %1234 = vmatprep.subr.mxu0 0.0
      %1235 = vmatpush1.msra.mxu0 0.0
      %1236 = vmatprep.subr.mxu0 0.0
      %1237 = vmatpush1.msra.mxu0 0.0
      %1238 = vmatprep.subr.mxu0 0.0
      %1239 = vmatpush1.msra.mxu0 0.0
      %1240 = vmatprep.subr.mxu0 0.0
      %1241 = vmatpush1.msra.mxu0 0.0
      %1242 = vmatprep.subr.mxu0 0.0
      %1243 = vmatpush1.msra.mxu0 0.0
      %1244 = vmatprep.subr.mxu0 0.0
      %1245 = vmatpush1.msra.mxu0 0.0
      %1246 = vmatprep.subr.mxu0 0.0
      %1247 = vmatpush1.msra.mxu0 0.0
      %1248 = vmatprep.subr.mxu0 0.0
      %1249 = vmatpush1.msra.mxu0 0.0
      %1250 = vmatprep.subr.mxu0 0.0
      %1251 = vmatpush1.msra.mxu0 0.0
      %1252 = vmatprep.subr.mxu0 0.0
      %1253 = vmatpush1.msra.mxu0 0.0
      %1254 = vmatprep.subr.mxu0 0.0
      %1255 = vmatpush1.msra.mxu0 0.0
      %1256 = vmatprep.subr.mxu0 0.0
      %1257 = vmatpush1.msra.mxu0 0.0
      %1258 = vmatprep.subr.mxu0 0.0
      %1259 = vmatpush1.msra.mxu0 0.0
      %1260 = vmatprep.subr.mxu0 0.0
      %1261 = vmatpush1.msra.mxu0 0.0
      %1262 = vmatprep.subr.mxu0 0.0
      %1263 = vmatpush1.msra.mxu0 0.0
      %1264 = vmatprep.subr.mxu0 0.0
      %1265 = vmatpush1.msra.mxu0 0.0
      %1266 = vmatprep.mubr.f32.mxu0 0.0
      %1267 = vmatmul.mubr.f32.gmra.mrb[0].mxu0 %v1197
      %v1268 = vpop.f32.mrb[0].mxu0
      %v1269 = vadd.f32 0.0, %v1268
      %v1270 = vpop.f32.mrb[0].mxu0
      %1271 = vdwg.mxu0
      %vm1272 = vcmask 523264
      %1273 = vst.msk [vmem:[%s657] sm:$0xff] %vm1272, %v1269
      %v1274 = vld [vmem:[%s10] sm:$0xff]
      %v1275 = vld [vmem:[%s10 + $0x8] sm:$0xff]
      %v1276 = vld [vmem:[%s10 + $0x10] sm:$0xff]
      %v1277 = vld [vmem:[%s10 + $0x18] sm:$0xff]
      %v1278 = vld [vmem:[%s10 + $0x20] sm:$0xff]
      %v1279 = vld [vmem:[%s10 + $0x28] sm:$0xff]
      %v1280 = vld [vmem:[%s10 + $0x30] sm:$0xff]
      %v1281 = vld [vmem:[%s10 + $0x38] sm:$0xff]
      %v1282 = vld [vmem:[%s10 + $0x40] sm:$0xff]
      %v1283 = vld [vmem:[%s10 + $0x48] sm:$0x3f]
      %v1285 = vsel %vm784, %v1283, 0
      %1287 = vmatprep.subr.mxu0 0.0
      %1288 = vmatpush1.msra.mxu0 %v1274
      %1289 = vmatprep.subr.mxu0 0.0
      %1290 = vmatpush1.msra.mxu0 %v1275
      %1291 = vmatprep.subr.mxu0 0.0
      %1292 = vmatpush1.msra.mxu0 %v1276
      %1293 = vmatprep.subr.mxu0 0.0
      %1294 = vmatpush1.msra.mxu0 %v1277
      %1295 = vmatprep.subr.mxu0 0.0
      %1296 = vmatpush1.msra.mxu0 %v1278
      %1297 = vmatprep.subr.mxu0 0.0
      %1298 = vmatpush1.msra.mxu0 %v1279
      %1299 = vmatprep.subr.mxu0 0.0
      %1300 = vmatpush1.msra.mxu0 %v1280
      %1301 = vmatprep.subr.mxu0 0.0
      %1302 = vmatpush1.msra.mxu0 %v1281
      %1303 = vmatprep.subr.mxu0 0.0
      %1304 = vmatpush1.msra.mxu0 %v1282
      %1305 = vmatprep.subr.mxu0 0.0
      %1306 = vmatpush1.msra.mxu0 %v1285
      %1307 = vmatprep.subr.mxu0 0.0
      %1308 = vmatpush1.msra.mxu0 0.0
      %1309 = vmatprep.subr.mxu0 0.0
      %1310 = vmatpush1.msra.mxu0 0.0
      %1311 = vmatprep.subr.mxu0 0.0
      %1312 = vmatpush1.msra.mxu0 0.0
      %1313 = vmatprep.subr.mxu0 0.0
      %1314 = vmatpush1.msra.mxu0 0.0
      %1315 = vmatprep.subr.mxu0 0.0
      %1316 = vmatpush1.msra.mxu0 0.0
      %1317 = vmatprep.subr.mxu0 0.0
      %1318 = vmatpush1.msra.mxu0 0.0
      %1319 = vmatprep.subr.mxu0 0.0
      %1320 = vmatpush1.msra.mxu0 0.0
      %1321 = vmatprep.subr.mxu0 0.0
      %1322 = vmatpush1.msra.mxu0 0.0
      %1323 = vmatprep.subr.mxu0 0.0
      %1324 = vmatpush1.msra.mxu0 0.0
      %1325 = vmatprep.subr.mxu0 0.0
      %1326 = vmatpush1.msra.mxu0 0.0
      %1327 = vmatprep.subr.mxu0 0.0
      %1328 = vmatpush1.msra.mxu0 0.0
      %1329 = vmatprep.subr.mxu0 0.0
      %1330 = vmatpush1.msra.mxu0 0.0
      %1331 = vmatprep.subr.mxu0 0.0
      %1332 = vmatpush1.msra.mxu0 0.0
      %1333 = vmatprep.subr.mxu0 0.0
      %1334 = vmatpush1.msra.mxu0 0.0
      %1335 = vmatprep.subr.mxu0 0.0
      %1336 = vmatpush1.msra.mxu0 0.0
      %1337 = vmatprep.subr.mxu0 0.0
      %1338 = vmatpush1.msra.mxu0 0.0
      %1339 = vmatprep.subr.mxu0 0.0
      %1340 = vmatpush1.msra.mxu0 0.0
      %1341 = vmatprep.subr.mxu0 0.0
      %1342 = vmatpush1.msra.mxu0 0.0
      %1343 = vmatprep.subr.mxu0 0.0
      %1344 = vmatpush1.msra.mxu0 0.0
      %1345 = vmatprep.subr.mxu0 0.0
      %1346 = vmatpush1.msra.mxu0 0.0
      %1347 = vmatprep.subr.mxu0 0.0
      %1348 = vmatpush1.msra.mxu0 0.0
      %1349 = vmatprep.subr.mxu0 0.0
      %1350 = vmatpush1.msra.mxu0 0.0
      %1351 = vmatprep.mubr.f32.mxu0 0.0
      %1352 = vmatmul.mubr.f32.gmra.mrb[0].mxu0 %v1197
      %v1353 = vpop.f32.mrb[0].mxu0
      %v1354 = vadd.f32 0.0, %v1353
      %v1355 = vpop.f32.mrb[0].mxu0
      %1356 = vdwg.mxu0
      %v1357 = vld [vmem:[%s5] sm:$0xf]
      %v1358 = vpack.c.bf16 %v1354, %v1354
      %v1360 = vrot.slane %v1358, 4
      %1361 = vrot.lane.b32.xlu0 %v1360, 127
      %v1362 = vpop.permute.xlu0 %1361
      %1363 = vrot.lane.b32.xlu0 %v1358, 126
      %v1364 = vpop.permute.xlu0 %1363
      %1365 = vrot.lane.b32.xlu0 %v1360, 118
      %v1366 = vpop.permute.xlu0 %1365
      %1367 = vrot.lane.b32.xlu0 %v1358, 117
      %v1368 = vpop.permute.xlu0 %1367
      %1369 = vrot.lane.b32.xlu0 %v1360, 116
      %v1370 = vpop.permute.xlu0 %1369
      %1371 = vrot.lane.b32.xlu0 %v1358, 108
      %v1372 = vpop.permute.xlu0 %1371
      %1373 = vrot.lane.b32.xlu0 %v1360, 107
      %v1374 = vpop.permute.xlu0 %1373
      %1375 = vrot.lane.b32.xlu0 %v1358, 106
      %v1376 = vpop.permute.xlu0 %1375
      %v1379 = vsel %vm777, %v1358, %v1362
      %v1383 = vsel %vm777, %v1364, %v1366
      %v1387 = vsel %vm777, %v1368, %v1370
      %v1391 = vsel %vm777, %v1372, %v1374
      %v1394 = vsel %vm1137, %v1357, 0
      %v1397 = vsel %vm777, %v1376, 0
      %1399 = vmatprep.subr.bf16.mxu0 0
      %1400 = vmatpush1.bf16.msra.mxu0 %v1379
      %1401 = vmatprep.subr.bf16.mxu0 0
      %1402 = vmatpush1.bf16.msra.mxu0 %v1383
      %1403 = vmatprep.subr.bf16.mxu0 0
      %1404 = vmatpush1.bf16.msra.mxu0 %v1387
      %1405 = vmatprep.subr.bf16.mxu0 0
      %1406 = vmatpush1.bf16.msra.mxu0 %v1391
      %1407 = vmatprep.subr.bf16.mxu0 0
      %1408 = vmatpush1.bf16.msra.mxu0 %v1397
      %1409 = vmatprep.subr.bf16.mxu0 0
      %1410 = vmatpush1.bf16.msra.mxu0 0
      %1411 = vmatprep.subr.bf16.mxu0 0
      %1412 = vmatpush1.bf16.msra.mxu0 0
      %1413 = vmatprep.subr.bf16.mxu0 0
      %1414 = vmatpush1.bf16.msra.mxu0 0
      %1415 = vmatprep.subr.bf16.mxu0 0
      %1416 = vmatpush1.bf16.msra.mxu0 0
      %1417 = vmatprep.subr.bf16.mxu0 0
      %1418 = vmatpush1.bf16.msra.mxu0 0
      %1419 = vmatprep.subr.bf16.mxu0 0
      %1420 = vmatpush1.bf16.msra.mxu0 0
      %1421 = vmatprep.subr.bf16.mxu0 0
      %1422 = vmatpush1.bf16.msra.mxu0 0
      %1423 = vmatprep.subr.bf16.mxu0 0
      %1424 = vmatpush1.bf16.msra.mxu0 0
      %1425 = vmatprep.subr.bf16.mxu0 0
      %1426 = vmatpush1.bf16.msra.mxu0 0
      %1427 = vmatprep.subr.bf16.mxu0 0
      %1428 = vmatpush1.bf16.msra.mxu0 0
      %1429 = vmatprep.subr.bf16.mxu0 0
      %1430 = vmatpush1.bf16.msra.mxu0 0
      %1431 = vmatprep.mubr.bf16.mxu0 0
      %1432 = vmatmul.mubr.bf16.gmra.mrb[0].mxu0 %v1394
      %v1433 = vpop.f32.mrb[0].mxu0
      %v1434 = vadd.f32 0.0, %v1433
      %v1435 = vpop.f32.mrb[0].mxu0
      %v1436 = vpop.f32.mrb[0].mxu0
      %v1437 = vpop.f32.mrb[0].mxu0
      %1438 = vdwg.mxu0
      %v1439 = vld [vmem:[%s12] sm:$0xff]
      %v1440 = vld [vmem:[%s12 + $0x8] sm:$0xff]
      %v1441 = vld [vmem:[%s12 + $0x10] sm:$0xff]
      %v1442 = vld [vmem:[%s12 + $0x18] sm:$0xff]
      %v1443 = vld [vmem:[%s12 + $0x20] sm:$0xff]
      %v1444 = vld [vmem:[%s12 + $0x28] sm:$0xff]
      %v1445 = vld [vmem:[%s12 + $0x30] sm:$0xff]
      %v1446 = vld [vmem:[%s12 + $0x38] sm:$0xff]
      %v1447 = vld [vmem:[%s12 + $0x40] sm:$0xff]
      %v1448 = vld [vmem:[%s12 + $0x48] sm:$0x3f]
      %v1450 = vsel %vm1195, %v1434, 0
      %v1453 = vsel %vm784, %v1448, 0
      %1455 = vmatprep.subr.mxu0 0.0
      %1456 = vmatpush1.msra.mxu0 %v1439
      %1457 = vmatprep.subr.mxu0 0.0
      %1458 = vmatpush1.msra.mxu0 %v1440
      %1459 = vmatprep.subr.mxu0 0.0
      %1460 = vmatpush1.msra.mxu0 %v1441
      %1461 = vmatprep.subr.mxu0 0.0
      %1462 = vmatpush1.msra.mxu0 %v1442
      %1463 = vmatprep.subr.mxu0 0.0
      %1464 = vmatpush1.msra.mxu0 %v1443
      %1465 = vmatprep.subr.mxu0 0.0
      %1466 = vmatpush1.msra.mxu0 %v1444
      %1467 = vmatprep.subr.mxu0 0.0
      %1468 = vmatpush1.msra.mxu0 %v1445
      %1469 = vmatprep.subr.mxu0 0.0
      %1470 = vmatpush1.msra.mxu0 %v1446
      %1471 = vmatprep.subr.mxu0 0.0
      %1472 = vmatpush1.msra.mxu0 %v1447
      %1473 = vmatprep.subr.mxu0 0.0
      %1474 = vmatpush1.msra.mxu0 %v1453
      %1475 = vmatprep.subr.mxu0 0.0
      %1476 = vmatpush1.msra.mxu0 0.0
      %1477 = vmatprep.subr.mxu0 0.0
      %1478 = vmatpush1.msra.mxu0 0.0
      %1479 = vmatprep.subr.mxu0 0.0
      %1480 = vmatpush1.msra.mxu0 0.0
      %1481 = vmatprep.subr.mxu0 0.0
      %1482 = vmatpush1.msra.mxu0 0.0
      %1483 = vmatprep.subr.mxu0 0.0
      %1484 = vmatpush1.msra.mxu0 0.0
      %1485 = vmatprep.subr.mxu0 0.0
      %1486 = vmatpush1.msra.mxu0 0.0
      %1487 = vmatprep.subr.mxu0 0.0
      %1488 = vmatpush1.msra.mxu0 0.0
      %1489 = vmatprep.subr.mxu0 0.0
      %1490 = vmatpush1.msra.mxu0 0.0
      %1491 = vmatprep.subr.mxu0 0.0
      %1492 = vmatpush1.msra.mxu0 0.0
      %1493 = vmatprep.subr.mxu0 0.0
      %1494 = vmatpush1.msra.mxu0 0.0
      %1495 = vmatprep.subr.mxu0 0.0
      %1496 = vmatpush1.msra.mxu0 0.0
      %1497 = vmatprep.subr.mxu0 0.0
      %1498 = vmatpush1.msra.mxu0 0.0
      %1499 = vmatprep.subr.mxu0 0.0
      %1500 = vmatpush1.msra.mxu0 0.0
      %1501 = vmatprep.subr.mxu0 0.0
      %1502 = vmatpush1.msra.mxu0 0.0
      %1503 = vmatprep.subr.mxu0 0.0
      %1504 = vmatpush1.msra.mxu0 0.0
      %1505 = vmatprep.subr.mxu0 0.0
      %1506 = vmatpush1.msra.mxu0 0.0
      %1507 = vmatprep.subr.mxu0 0.0
      %1508 = vmatpush1.msra.mxu0 0.0
      %1509 = vmatprep.subr.mxu0 0.0
      %1510 = vmatpush1.msra.mxu0 0.0
      %1511 = vmatprep.subr.mxu0 0.0
      %1512 = vmatpush1.msra.mxu0 0.0
      %1513 = vmatprep.subr.mxu0 0.0
      %1514 = vmatpush1.msra.mxu0 0.0
      %1515 = vmatprep.subr.mxu0 0.0
      %1516 = vmatpush1.msra.mxu0 0.0
      %1517 = vmatprep.subr.mxu0 0.0
      %1518 = vmatpush1.msra.mxu0 0.0
      %1519 = vmatprep.mubr.f32.mxu0 0.0
      %1520 = vmatmul.mubr.f32.gmra.mrb[0].mxu0 %v1450
      %v1521 = vpop.f32.mrb[0].mxu0
      %v1522 = vadd.f32 0.0, %v1521
      %v1523 = vpop.f32.mrb[0].mxu0
      %1524 = vdwg.mxu0
      %v1525 = vmax.f32 %v1522, 0.0
      %v1526 = vld [vmem:[%s6] sm:$0xf]
      %v1527 = vld [vmem:[%s6 + $0x4] sm:$0xf]
      %v1528 = vpack.c.bf16 %v1525, %v1525
      %v1530 = vrot.slane %v1528, 4
      %1531 = vrot.lane.b32.xlu0 %v1530, 127
      %v1532 = vpop.permute.xlu0 %1531
      %1533 = vrot.lane.b32.xlu0 %v1528, 126
      %v1534 = vpop.permute.xlu0 %1533
      %1535 = vrot.lane.b32.xlu0 %v1530, 122
      %v1536 = vpop.permute.xlu0 %1535
      %1537 = vrot.lane.b32.xlu0 %v1528, 121
      %v1538 = vpop.permute.xlu0 %1537
      %1539 = vrot.lane.b32.xlu0 %v1530, 120
      %v1540 = vpop.permute.xlu0 %1539
      %1541 = vrot.lane.b32.xlu0 %v1528, 116
      %v1542 = vpop.permute.xlu0 %1541
      %1543 = vrot.lane.b32.xlu0 %v1530, 115
      %v1544 = vpop.permute.xlu0 %1543
      %1545 = vrot.lane.b32.xlu0 %v1528, 114
      %v1546 = vpop.permute.xlu0 %1545
      %v1549 = vsel %vm777, %v1528, %v1532
      %v1553 = vsel %vm777, %v1534, %v1536
      %v1557 = vsel %vm777, %v1538, %v1540
      %v1561 = vsel %vm777, %v1542, %v1544
      %v1563 = vld [vmem:[%s648] sm:$0xff]
      %v1564 = vld [vmem:[%s648 + $0x8] sm:$0xff]
      %v1567 = vunpack.c.l.b16 %v1526
      %v1568 = vunpack.c.l.b16 %v1527
      %v1569 = vpack.c.b16 %v1568, %v1567
      %1572 = vrot.lane.b32.xlu0 %v1563, 121
      %v1573 = vpop.permute.xlu0 %1572
      %1574 = vrot.lane.b32.xlu0 %v1564, 121
      %v1575 = vpop.permute.xlu0 %1574
      %v1579 = vsel %vm1137, %v1569, 0
      %v1582 = vsel %vm777, %v1546, 0
      %1584 = vmatprep.subr.bf16.mxu0 0
      %1585 = vmatpush1.bf16.msra.mxu0 %v1549
      %1586 = vmatprep.subr.bf16.mxu0 0
      %1587 = vmatpush1.bf16.msra.mxu0 %v1553
      %1588 = vmatprep.subr.bf16.mxu0 0
      %1589 = vmatpush1.bf16.msra.mxu0 %v1557
      %1590 = vmatprep.subr.bf16.mxu0 0
      %1591 = vmatpush1.bf16.msra.mxu0 %v1561
      %1592 = vmatprep.subr.bf16.mxu0 0
      %1593 = vmatpush1.bf16.msra.mxu0 %v1582
      %1594 = vmatprep.subr.bf16.mxu0 0
      %1595 = vmatpush1.bf16.msra.mxu0 0
      %1596 = vmatprep.subr.bf16.mxu0 0
      %1597 = vmatpush1.bf16.msra.mxu0 0
      %1598 = vmatprep.subr.bf16.mxu0 0
      %1599 = vmatpush1.bf16.msra.mxu0 0
      %1600 = vmatprep.subr.bf16.mxu0 0
      %1601 = vmatpush1.bf16.msra.mxu0 0
      %1602 = vmatprep.subr.bf16.mxu0 0
      %1603 = vmatpush1.bf16.msra.mxu0 0
      %1604 = vmatprep.subr.bf16.mxu0 0
      %1605 = vmatpush1.bf16.msra.mxu0 0
      %1606 = vmatprep.subr.bf16.mxu0 0
      %1607 = vmatpush1.bf16.msra.mxu0 0
      %1608 = vmatprep.subr.bf16.mxu0 0
      %1609 = vmatpush1.bf16.msra.mxu0 0
      %1610 = vmatprep.subr.bf16.mxu0 0
      %1611 = vmatpush1.bf16.msra.mxu0 0
      %1612 = vmatprep.subr.bf16.mxu0 0
      %1613 = vmatpush1.bf16.msra.mxu0 0
      %1614 = vmatprep.subr.bf16.mxu0 0
      %1615 = vmatpush1.bf16.msra.mxu0 0
      %1616 = vmatprep.mubr.bf16.mxu0 0
      %1617 = vmatmul.mubr.bf16.gmra.mrb[0].mxu0 %v1579
      %v1618 = vpop.f32.mrb[0].mxu0
      %v1619 = vadd.f32 %v1573, %v1618
      %v1620 = vpop.f32.mrb[0].mxu0
      %v1621 = vpop.f32.mrb[0].mxu0
      %v1622 = vadd.f32 %v1575, %v1621
      %v1623 = vpop.f32.mrb[0].mxu0
      %1624 = vdwg.mxu0
      %v1625 = vmax.f32 %v1619, 0.0
      %v1626 = vmax.f32 %v1622, 0.0
      %v1627 = vld [vmem:[%s14] sm:$0xff]
      %v1628 = vld [vmem:[%s14 + $0x8] sm:$0xff]
      %v1629 = vld [vmem:[%s14 + $0x10] sm:$0x3f]
      %vm1630 = vcmask 179200
      %v1632 = vsel %vm1630, %v1625, 0
      %v1635 = vsel %vm1630, %v1626, 0
      %v1638 = vsel %vm784, %v1629, 0
      %1640 = vmatprep.subr.mxu0 0.0
      %1641 = vmatpush1.msra.mxu0 %v1627
      %1642 = vmatprep.subr.mxu0 0.0
      %1643 = vmatpush1.msra.mxu0 %v1628
      %1644 = vmatprep.subr.mxu0 0.0
      %1645 = vmatpush1.msra.mxu0 %v1638
      %1646 = vmatprep.subr.mxu0 0.0
      %1647 = vmatpush1.msra.mxu0 0.0
      %1648 = vmatprep.subr.mxu0 0.0
      %1649 = vmatpush1.msra.mxu0 0.0
      %1650 = vmatprep.subr.mxu0 0.0
      %1651 = vmatpush1.msra.mxu0 0.0
      %1652 = vmatprep.subr.mxu0 0.0
      %1653 = vmatpush1.msra.mxu0 0.0
      %1654 = vmatprep.subr.mxu0 0.0
      %1655 = vmatpush1.msra.mxu0 0.0
      %1656 = vmatprep.subr.mxu0 0.0
      %1657 = vmatpush1.msra.mxu0 0.0
      %1658 = vmatprep.subr.mxu0 0.0
      %1659 = vmatpush1.msra.mxu0 0.0
      %1660 = vmatprep.subr.mxu0 0.0
      %1661 = vmatpush1.msra.mxu0 0.0
      %1662 = vmatprep.subr.mxu0 0.0
      %1663 = vmatpush1.msra.mxu0 0.0
      %1664 = vmatprep.subr.mxu0 0.0
      %1665 = vmatpush1.msra.mxu0 0.0
      %1666 = vmatprep.subr.mxu0 0.0
      %1667 = vmatpush1.msra.mxu0 0.0
      %1668 = vmatprep.subr.mxu0 0.0
      %1669 = vmatpush1.msra.mxu0 0.0
      %1670 = vmatprep.subr.mxu0 0.0
      %1671 = vmatpush1.msra.mxu0 0.0
      %1672 = vmatprep.subr.mxu0 0.0
      %1673 = vmatpush1.msra.mxu0 0.0
      %1674 = vmatprep.subr.mxu0 0.0
      %1675 = vmatpush1.msra.mxu0 0.0
      %1676 = vmatprep.subr.mxu0 0.0
      %1677 = vmatpush1.msra.mxu0 0.0
      %1678 = vmatprep.subr.mxu0 0.0
      %1679 = vmatpush1.msra.mxu0 0.0
      %1680 = vmatprep.subr.mxu0 0.0
      %1681 = vmatpush1.msra.mxu0 0.0
      %1682 = vmatprep.subr.mxu0 0.0
      %1683 = vmatpush1.msra.mxu0 0.0
      %1684 = vmatprep.subr.mxu0 0.0
      %1685 = vmatpush1.msra.mxu0 0.0
      %1686 = vmatprep.subr.mxu0 0.0
      %1687 = vmatpush1.msra.mxu0 0.0
      %1688 = vmatprep.subr.mxu0 0.0
      %1689 = vmatpush1.msra.mxu0 0.0
      %1690 = vmatprep.subr.mxu0 0.0
      %1691 = vmatpush1.msra.mxu0 0.0
      %1692 = vmatprep.subr.mxu0 0.0
      %1693 = vmatpush1.msra.mxu0 0.0
      %1694 = vmatprep.subr.mxu0 0.0
      %1695 = vmatpush1.msra.mxu0 0.0
      %1696 = vmatprep.subr.mxu0 0.0
      %1697 = vmatpush1.msra.mxu0 0.0
      %1698 = vmatprep.subr.mxu0 0.0
      %1699 = vmatpush1.msra.mxu0 0.0
      %1700 = vmatprep.subr.mxu0 0.0
      %1701 = vmatpush1.msra.mxu0 0.0
      %1702 = vmatprep.subr.mxu0 0.0
      %1703 = vmatpush1.msra.mxu0 0.0
      %1704 = vmatprep.mubr.f32.mxu0 0.0
      %1705 = vmatmul.mubr.f32.gmra.mrb[0].mxu0 %v1632
      %v1706 = vpop.f32.mrb[0].mxu0
      %v1707 = vadd.f32 0.0, %v1706
      %v1708 = vpop.f32.mrb[0].mxu0
      %1709 = vmatprep.mubr.f32.mxu0 0.0
      %1710 = vmatmul.mubr.f32.gmra.mrb[0].mxu0 %v1635
      %v1711 = vpop.f32.mrb[0].mxu0
      %v1712 = vadd.f32 0.0, %v1711
      %v1713 = vpop.f32.mrb[0].mxu0
      %1714 = vdwg.mxu0
      %vm1715 = vcmask 130048
      %1716 = vst.msk [vmem:[%s662] sm:$0xff] %vm1715, %v1707
      %1717 = vst.msk [vmem:[%s662 + $0x8] sm:$0xff] %vm1715, %v1712
      %v1718 = vld [vmem:[%s13] sm:$0xff]
      %v1719 = vld [vmem:[%s13 + $0x8] sm:$0xff]
      %v1720 = vld [vmem:[%s13 + $0x10] sm:$0x3f]
      %v1722 = vsel %vm784, %v1720, 0
      %1724 = vmatprep.subr.mxu0 0.0
      %1725 = vmatpush1.msra.mxu0 %v1718
      %1726 = vmatprep.subr.mxu0 0.0
      %1727 = vmatpush1.msra.mxu0 %v1719
      %1728 = vmatprep.subr.mxu0 0.0
      %1729 = vmatpush1.msra.mxu0 %v1722
      %1730 = vmatprep.subr.mxu0 0.0
      %1731 = vmatpush1.msra.mxu0 0.0
      %1732 = vmatprep.subr.mxu0 0.0
      %1733 = vmatpush1.msra.mxu0 0.0
      %1734 = vmatprep.subr.mxu0 0.0
      %1735 = vmatpush1.msra.mxu0 0.0
      %1736 = vmatprep.subr.mxu0 0.0
      %1737 = vmatpush1.msra.mxu0 0.0
      %1738 = vmatprep.subr.mxu0 0.0
      %1739 = vmatpush1.msra.mxu0 0.0
      %1740 = vmatprep.subr.mxu0 0.0
      %1741 = vmatpush1.msra.mxu0 0.0
      %1742 = vmatprep.subr.mxu0 0.0
      %1743 = vmatpush1.msra.mxu0 0.0
      %1744 = vmatprep.subr.mxu0 0.0
      %1745 = vmatpush1.msra.mxu0 0.0
      %1746 = vmatprep.subr.mxu0 0.0
      %1747 = vmatpush1.msra.mxu0 0.0
      %1748 = vmatprep.subr.mxu0 0.0
      %1749 = vmatpush1.msra.mxu0 0.0
      %1750 = vmatprep.subr.mxu0 0.0
      %1751 = vmatpush1.msra.mxu0 0.0
      %1752 = vmatprep.subr.mxu0 0.0
      %1753 = vmatpush1.msra.mxu0 0.0
      %1754 = vmatprep.subr.mxu0 0.0
      %1755 = vmatpush1.msra.mxu0 0.0
      %1756 = vmatprep.subr.mxu0 0.0
      %1757 = vmatpush1.msra.mxu0 0.0
      %1758 = vmatprep.subr.mxu0 0.0
      %1759 = vmatpush1.msra.mxu0 0.0
      %1760 = vmatprep.subr.mxu0 0.0
      %1761 = vmatpush1.msra.mxu0 0.0
      %1762 = vmatprep.subr.mxu0 0.0
      %1763 = vmatpush1.msra.mxu0 0.0
      %1764 = vmatprep.subr.mxu0 0.0
      %1765 = vmatpush1.msra.mxu0 0.0
      %1766 = vmatprep.subr.mxu0 0.0
      %1767 = vmatpush1.msra.mxu0 0.0
      %1768 = vmatprep.subr.mxu0 0.0
      %1769 = vmatpush1.msra.mxu0 0.0
      %1770 = vmatprep.subr.mxu0 0.0
      %1771 = vmatpush1.msra.mxu0 0.0
      %1772 = vmatprep.subr.mxu0 0.0
      %1773 = vmatpush1.msra.mxu0 0.0
      %1774 = vmatprep.subr.mxu0 0.0
      %1775 = vmatpush1.msra.mxu0 0.0
      %1776 = vmatprep.subr.mxu0 0.0
      %1777 = vmatpush1.msra.mxu0 0.0
      %1778 = vmatprep.subr.mxu0 0.0
      %1779 = vmatpush1.msra.mxu0 0.0
      %1780 = vmatprep.subr.mxu0 0.0
      %1781 = vmatpush1.msra.mxu0 0.0
      %1782 = vmatprep.subr.mxu0 0.0
      %1783 = vmatpush1.msra.mxu0 0.0
      %1784 = vmatprep.subr.mxu0 0.0
      %1785 = vmatpush1.msra.mxu0 0.0
      %1786 = vmatprep.subr.mxu0 0.0
      %1787 = vmatpush1.msra.mxu0 0.0
      %1788 = vmatprep.mubr.f32.mxu0 0.0
      %1789 = vmatmul.mubr.f32.gmra.mrb[0].mxu0 %v1632
      %v1790 = vpop.f32.mrb[0].mxu0
      %v1791 = vadd.f32 0.0, %v1790
      %v1792 = vpop.f32.mrb[0].mxu0
      %1793 = vmatprep.mubr.f32.mxu0 0.0
      %1794 = vmatmul.mubr.f32.gmra.mrb[0].mxu0 %v1635
      %v1795 = vpop.f32.mrb[0].mxu0
      %v1796 = vadd.f32 0.0, %v1795
      %v1797 = vpop.f32.mrb[0].mxu0
      %1798 = vdwg.mxu0
      %v1799 = vld [vmem:[%s7] sm:$0xf]
      %v1800 = vld [vmem:[%s7 + $0x4] sm:$0xf]
      %v1801 = vld [vmem:[%s7 + $0x8] sm:$0xf]
      %v1802 = vld [vmem:[%s7 + $0xc] sm:$0xf]
      %v1803 = vpack.c.bf16 %v1796, %v1791
      %1805 = vrot.lane.b32.xlu0 %v1803, 127
      %v1806 = vpop.permute.xlu0 %1805
      %1807 = vrot.lane.b32.xlu0 %v1803, 122
      %v1808 = vpop.permute.xlu0 %1807
      %1809 = vrot.lane.b32.xlu0 %v1803, 121
      %v1810 = vpop.permute.xlu0 %1809
      %v1815 = vunpack.c.l.b16 %v1799
      %v1816 = vunpack.c.l.b16 %v1800
      %v1817 = vunpack.c.l.b16 %v1801
      %v1818 = vunpack.c.l.b16 %v1802
      %v1819 = vpack.c.b16 %v1816, %v1815
      %v1820 = vpack.c.b16 %v1818, %v1817
      %1821 = vrot.lane.b32.xlu0 %v1806, 121
      %v1822 = vpop.permute.xlu0 %1821
      %1823 = vrot.lane.b32.xlu0 %v1808, 121
      %v1824 = vpop.permute.xlu0 %1823
      %1825 = vrot.lane.b32.xlu0 %v1810, 121
      %v1826 = vpop.permute.xlu0 %1825
      %v1832 = vsel %vm1272, %v1819, 0
      %v1835 = vsel %vm1272, %v1820, 0
      %1837 = vmatprep.subr.bf16.mxu0 0
      %1838 = vmatpush1.bf16.msra.mxu0 %v1810
      %1839 = vmatprep.subr.bf16.mxu0 0
      %1840 = vmatpush1.bf16.msra.mxu0 %v1822
      %1841 = vmatprep.subr.bf16.mxu0 0
      %1842 = vmatpush1.bf16.msra.mxu0 %v1824
      %1843 = vmatprep.subr.bf16.mxu0 0
      %1844 = vmatpush1.bf16.msra.mxu0 %v1826
      %1845 = vmatprep.subr.bf16.mxu0 0
      %1846 = vmatpush1.bf16.msra.mxu0 0
      %1847 = vmatprep.subr.bf16.mxu0 0
      %1848 = vmatpush1.bf16.msra.mxu0 0
      %1849 = vmatprep.subr.bf16.mxu0 0
      %1850 = vmatpush1.bf16.msra.mxu0 0
      %1851 = vmatprep.subr.bf16.mxu0 0
      %1852 = vmatpush1.bf16.msra.mxu0 0
      %1853 = vmatprep.subr.bf16.mxu0 0
      %1854 = vmatpush1.bf16.msra.mxu0 0
      %1855 = vmatprep.subr.bf16.mxu0 0
      %1856 = vmatpush1.bf16.msra.mxu0 0
      %1857 = vmatprep.subr.bf16.mxu0 0
      %1858 = vmatpush1.bf16.msra.mxu0 0
      %1859 = vmatprep.subr.bf16.mxu0 0
      %1860 = vmatpush1.bf16.msra.mxu0 0
      %1861 = vmatprep.subr.bf16.mxu0 0
      %1862 = vmatpush1.bf16.msra.mxu0 0
      %1863 = vmatprep.subr.bf16.mxu0 0
      %1864 = vmatpush1.bf16.msra.mxu0 0
      %1865 = vmatprep.subr.bf16.mxu0 0
      %1866 = vmatpush1.bf16.msra.mxu0 0
      %1867 = vmatprep.subr.bf16.mxu0 0
      %1868 = vmatpush1.bf16.msra.mxu0 0
      %1869 = vmatprep.mubr.bf16.mxu0 0
      %1870 = vmatmul.mubr.bf16.gmra.mrb[0].mxu0 %v1832
      %v1871 = vpop.f32.mrb[0].mxu0
      %v1872 = vadd.f32 0.0, %v1871
      %v1873 = vpop.f32.mrb[0].mxu0
      %v1874 = vpop.f32.mrb[0].mxu0
      %v1875 = vadd.f32 0.0, %v1874
      %v1876 = vpop.f32.mrb[0].mxu0
      %1877 = vmatprep.mubr.bf16.mxu0 0
      %1878 = vmatmul.mubr.bf16.gmra.mrb[0].mxu0 %v1835
      %v1879 = vpop.f32.mrb[0].mxu0
      %v1880 = vadd.f32 0.0, %v1879
      %v1881 = vpop.f32.mrb[0].mxu0
      %v1882 = vpop.f32.mrb[0].mxu0
      %v1883 = vadd.f32 0.0, %v1882
      %v1884 = vpop.f32.mrb[0].mxu0
      %1885 = vdwg.mxu0
      %1887 = vrot.lane.b32.xlu0 %v1875, 22
      %v1888 = vpop.permute.xlu0 %1887
      %1891 = vrot.lane.b32.xlu0 %v1880, 44
      %v1892 = vpop.permute.xlu0 %1891
      %1895 = vrot.lane.b32.xlu0 %v1883, 66
      %v1896 = vpop.permute.xlu0 %1895
      %v1898 = vsel %vm1630, %v1872, %v1888
      %vm1899 = vcmask 359424
      %v1900 = vsel %vm1899, %v1898, %v1892
      %vm1901 = vcmask 539648
      %v1902 = vsel %vm1901, %v1900, %v1896
      %v1903 = vld [vmem:[%s15] sm:$0xff]
      %v1904 = vld [vmem:[%s15 + $0x8] sm:$0xff]
      %v1905 = vld [vmem:[%s15 + $0x10] sm:$0xff]
      %v1906 = vld [vmem:[%s15 + $0x18] sm:$0xff]
      %v1907 = vld [vmem:[%s15 + $0x20] sm:$0xff]
      %v1908 = vld [vmem:[%s15 + $0x28] sm:$0xff]
      %v1909 = vld [vmem:[%s15 + $0x30] sm:$0xff]
      %v1910 = vld [vmem:[%s15 + $0x38] sm:$0xff]
      %v1911 = vld [vmem:[%s15 + $0x40] sm:$0xff]
      %v1912 = vld [vmem:[%s15 + $0x48] sm:$0xff]
      %v1913 = vld [vmem:[%s15 + $0x50] sm:$0xff]
      %vm1914 = vcmask 719872
      %v1916 = vsel %vm1914, %v1902, 0
      %1918 = vmatprep.subr.mxu0 0.0
      %1919 = vmatpush1.msra.mxu0 %v1903
      %1920 = vmatprep.subr.mxu0 0.0
      %1921 = vmatpush1.msra.mxu0 %v1904
      %1922 = vmatprep.subr.mxu0 0.0
      %1923 = vmatpush1.msra.mxu0 %v1905
      %1924 = vmatprep.subr.mxu0 0.0
      %1925 = vmatpush1.msra.mxu0 %v1906
      %1926 = vmatprep.subr.mxu0 0.0
      %1927 = vmatpush1.msra.mxu0 %v1907
      %1928 = vmatprep.subr.mxu0 0.0
      %1929 = vmatpush1.msra.mxu0 %v1908
      %1930 = vmatprep.subr.mxu0 0.0
      %1931 = vmatpush1.msra.mxu0 %v1909
      %1932 = vmatprep.subr.mxu0 0.0
      %1933 = vmatpush1.msra.mxu0 %v1910
      %1934 = vmatprep.subr.mxu0 0.0
      %1935 = vmatpush1.msra.mxu0 %v1911
      %1936 = vmatprep.subr.mxu0 0.0
      %1937 = vmatpush1.msra.mxu0 %v1912
      %1938 = vmatprep.subr.mxu0 0.0
      %1939 = vmatpush1.msra.mxu0 %v1913
      %1940 = vmatprep.subr.mxu0 0.0
      %1941 = vmatpush1.msra.mxu0 0.0
      %1942 = vmatprep.subr.mxu0 0.0
      %1943 = vmatpush1.msra.mxu0 0.0
      %1944 = vmatprep.subr.mxu0 0.0
      %1945 = vmatpush1.msra.mxu0 0.0
      %1946 = vmatprep.subr.mxu0 0.0
      %1947 = vmatpush1.msra.mxu0 0.0
      %1948 = vmatprep.subr.mxu0 0.0
      %1949 = vmatpush1.msra.mxu0 0.0
      %1950 = vmatprep.subr.mxu0 0.0
      %1951 = vmatpush1.msra.mxu0 0.0
      %1952 = vmatprep.subr.mxu0 0.0
      %1953 = vmatpush1.msra.mxu0 0.0
      %1954 = vmatprep.subr.mxu0 0.0
      %1955 = vmatpush1.msra.mxu0 0.0
      %1956 = vmatprep.subr.mxu0 0.0
      %1957 = vmatpush1.msra.mxu0 0.0
      %1958 = vmatprep.subr.mxu0 0.0
      %1959 = vmatpush1.msra.mxu0 0.0
      %1960 = vmatprep.subr.mxu0 0.0
      %1961 = vmatpush1.msra.mxu0 0.0
      %1962 = vmatprep.subr.mxu0 0.0
      %1963 = vmatpush1.msra.mxu0 0.0
      %1964 = vmatprep.subr.mxu0 0.0
      %1965 = vmatpush1.msra.mxu0 0.0
      %1966 = vmatprep.subr.mxu0 0.0
      %1967 = vmatpush1.msra.mxu0 0.0
      %1968 = vmatprep.subr.mxu0 0.0
      %1969 = vmatpush1.msra.mxu0 0.0
      %1970 = vmatprep.subr.mxu0 0.0
      %1971 = vmatpush1.msra.mxu0 0.0
      %1972 = vmatprep.subr.mxu0 0.0
      %1973 = vmatpush1.msra.mxu0 0.0
      %1974 = vmatprep.subr.mxu0 0.0
      %1975 = vmatpush1.msra.mxu0 0.0
      %1976 = vmatprep.subr.mxu0 0.0
      %1977 = vmatpush1.msra.mxu0 0.0
      %1978 = vmatprep.subr.mxu0 0.0
      %1979 = vmatpush1.msra.mxu0 0.0
      %1980 = vmatprep.subr.mxu0 0.0
      %1981 = vmatpush1.msra.mxu0 0.0
      %1982 = vmatprep.mubr.f32.mxu0 0.0
      %1983 = vmatmul.mubr.f32.gmra.mrb[0].mxu0 %v1916
      %v1984 = vpop.f32.mrb[0].mxu0
      %v1985 = vadd.f32 0.0, %v1984
      %v1986 = vpop.f32.mrb[0].mxu0
      %1987 = vdwg.mxu0
      %v1988 = vmax.f32 %v1985, 0.0
      %v1989 = vld [vmem:[%s8] sm:$0xf]
      %v1990 = vld [vmem:[%s8 + $0x4] sm:$0xf]
      %v1991 = vpack.c.bf16 %v1988, %v1988
      %v1993 = vrot.slane %v1991, 4
      %1994 = vrot.lane.b32.xlu0 %v1993, 127
      %v1995 = vpop.permute.xlu0 %1994
      %1996 = vrot.lane.b32.xlu0 %v1991, 118
      %v1997 = vpop.permute.xlu0 %1996
      %1998 = vrot.lane.b32.xlu0 %v1993, 117
      %v1999 = vpop.permute.xlu0 %1998
      %v2002 = vsel %vm777, %v1991, %v1995
      %v2005 = vsel %vm777, %v1997, %v1999
      %v2008 = vunpack.c.l.b16 %v1989
      %v2009 = vunpack.c.l.b16 %v1990
      %v2010 = vpack.c.b16 %v2009, %v2008
      %2013 = vrot.lane.b32.xlu0 %v2002, 117
      %v2014 = vpop.permute.xlu0 %2013
      %2015 = vrot.lane.b32.xlu0 %v2005, 117
      %v2016 = vpop.permute.xlu0 %2015
      %vm2019 = vcmask 261120
      %v2021 = vsel %vm2019, %v2010, 0
      %2023 = vmatprep.subr.bf16.mxu0 0
      %2024 = vmatpush1.bf16.msra.mxu0 %v2014
      %2025 = vmatprep.subr.bf16.mxu0 0
      %2026 = vmatpush1.bf16.msra.mxu0 %v2016
      %2027 = vmatprep.subr.bf16.mxu0 0
      %2028 = vmatpush1.bf16.msra.mxu0 0
      %2029 = vmatprep.subr.bf16.mxu0 0
      %2030 = vmatpush1.bf16.msra.mxu0 0
      %2031 = vmatprep.subr.bf16.mxu0 0
      %2032 = vmatpush1.bf16.msra.mxu0 0
      %2033 = vmatprep.subr.bf16.mxu0 0
      %2034 = vmatpush1.bf16.msra.mxu0 0
      %2035 = vmatprep.subr.bf16.mxu0 0
      %2036 = vmatpush1.bf16.msra.mxu0 0
      %2037 = vmatprep.subr.bf16.mxu0 0
      %2038 = vmatpush1.bf16.msra.mxu0 0
      %2039 = vmatprep.subr.bf16.mxu0 0
      %2040 = vmatpush1.bf16.msra.mxu0 0
      %2041 = vmatprep.subr.bf16.mxu0 0
      %2042 = vmatpush1.bf16.msra.mxu0 0
      %2043 = vmatprep.subr.bf16.mxu0 0
      %2044 = vmatpush1.bf16.msra.mxu0 0
      %2045 = vmatprep.subr.bf16.mxu0 0
      %2046 = vmatpush1.bf16.msra.mxu0 0
      %2047 = vmatprep.subr.bf16.mxu0 0
      %2048 = vmatpush1.bf16.msra.mxu0 0
      %2049 = vmatprep.subr.bf16.mxu0 0
      %2050 = vmatpush1.bf16.msra.mxu0 0
      %2051 = vmatprep.subr.bf16.mxu0 0
      %2052 = vmatpush1.bf16.msra.mxu0 0
      %2053 = vmatprep.subr.bf16.mxu0 0
      %2054 = vmatpush1.bf16.msra.mxu0 0
      %2055 = vmatprep.mubr.bf16.mxu0 0
      %2056 = vmatmul.mubr.bf16.gmra.mrb[0].mxu0 %v2021
      %v2057 = vpop.f32.mrb[0].mxu0
      %v2058 = vadd.f32 0.0, %v2057
      %v2059 = vpop.f32.mrb[0].mxu0
      %v2060 = vpop.f32.mrb[0].mxu0
      %v2061 = vadd.f32 0.0, %v2060
      %v2062 = vpop.f32.mrb[0].mxu0
      %2063 = vdwg.mxu0
      %v2065 = vrot.slane %v2058, 4
      %2066 = vrot.lane.b32.xlu0 %v2065, 78
      %v2067 = vpop.permute.xlu0 %2066
      %2070 = vrot.lane.b32.xlu0 %v2061, 28
      %v2071 = vpop.permute.xlu0 %2070
      %v2073 = vrot.slane %v2061, 4
      %2074 = vrot.lane.b32.xlu0 %v2073, 106
      %v2075 = vpop.permute.xlu0 %2074
      %v2077 = vsel %vm1195, %v2058, %v2067
      %vm2078 = vcmask 228352
      %v2079 = vsel %vm2078, %v2067, %v2071
      %vm2080 = vcmask 867328
      %v2081 = vsel %vm2080, %v2079, %v2075
      %v2082 = vld [vmem:[%s16] sm:$0xff]
      %v2083 = vld [vmem:[%s16 + $0x8] sm:$0xff]
      %v2084 = vld [vmem:[%s16 + $0x10] sm:$0xff]
      %v2085 = vld [vmem:[%s16 + $0x18] sm:$0xff]
      %v2086 = vld [vmem:[%s16 + $0x20] sm:$0xff]
      %v2087 = vld [vmem:[%s16 + $0x28] sm:$0xff]
      %v2088 = vld [vmem:[%s16 + $0x30] sm:$0xff]
      %v2089 = vld [vmem:[%s16 + $0x38] sm:$0xff]
      %v2090 = vld [vmem:[%s16 + $0x40] sm:$0xff]
      %v2091 = vld [vmem:[%s16 + $0x48] sm:$0xff]
      %v2092 = vld [vmem:[%s16 + $0x50] sm:$0xff]
      %v2093 = vld [vmem:[%s16 + $0x58] sm:$0xff]
      %v2094 = vld [vmem:[%s16 + $0x60] sm:$0xff]
      %v2095 = vld [vmem:[%s16 + $0x68] sm:$0xff]
      %v2096 = vld [vmem:[%s16 + $0x70] sm:$0xff]
      %v2097 = vld [vmem:[%s16 + $0x78] sm:$0xff]
      %v2098 = vld [vmem:[%s16 + $0x80] sm:$0xff]
      %v2099 = vld [vmem:[%s16 + $0x88] sm:$0xff]
      %v2100 = vld [vmem:[%s16 + $0x90] sm:$0xff]
      %v2101 = vld [vmem:[%s16 + $0x98] sm:$0xff]
      %v2102 = vld [vmem:[%s16 + $0xa0] sm:$0xff]
      %v2103 = vld [vmem:[%s16 + $0xa8] sm:$0xff]
      %v2104 = vld [vmem:[%s16 + $0xb0] sm:$0xff]
      %v2105 = vld [vmem:[%s16 + $0xb8] sm:$0xff]
      %v2106 = vld [vmem:[%s16 + $0xc0] sm:$0xff]
      %v2107 = vld [vmem:[%s16 + $0xc8] sm:$0xff]
      %v2108 = vld [vmem:[%s16 + $0xd0] sm:$0xff]
      %v2109 = vld [vmem:[%s16 + $0xd8] sm:$0xff]
      %v2110 = vld [vmem:[%s16 + $0xe0] sm:$0xff]
      %v2111 = vld [vmem:[%s16 + $0xe8] sm:$0xff]
      %v2112 = vld [vmem:[%s16 + $0xf0] sm:$0xff]
      %v2113 = vld [vmem:[%s16 + $0xf8] sm:$0xff]
      %v2114 = vld [vmem:[%s16 + $0x100] sm:$0xff]
      %v2115 = vld [vmem:[%s16 + $0x108] sm:$0xff]
      %v2116 = vld [vmem:[%s16 + $0x110] sm:$0xff]
      %v2117 = vld [vmem:[%s16 + $0x118] sm:$0xff]
      %v2118 = vld [vmem:[%s16 + $0x120] sm:$0xff]
      %v2119 = vld [vmem:[%s16 + $0x128] sm:$0xff]
      %v2120 = vld [vmem:[%s16 + $0x130] sm:$0xff]
      %v2121 = vld [vmem:[%s16 + $0x138] sm:$0xff]
      %v2122 = vld [vmem:[%s16 + $0x140] sm:$0xff]
      %v2123 = vld [vmem:[%s16 + $0x148] sm:$0xff]
      %v2124 = vld [vmem:[%s16 + $0x150] sm:$0xff]
      %v2125 = vld [vmem:[%s16 + $0x158] sm:$0xff]
      %v2126 = vld [vmem:[%s16 + $0x160] sm:$0xff]
      %v2127 = vld [vmem:[%s16 + $0x168] sm:$0xff]
      %v2128 = vld [vmem:[%s16 + $0x170] sm:$0xff]
      %v2129 = vld [vmem:[%s16 + $0x178] sm:$0xff]
      %v2130 = vld [vmem:[%s16 + $0x180] sm:$0xff]
      %v2131 = vld [vmem:[%s16 + $0x188] sm:$0xff]
      %v2132 = vld [vmem:[%s16 + $0x190] sm:$0xff]
      %v2133 = vld [vmem:[%s16 + $0x198] sm:$0xff]
      %v2134 = vld [vmem:[%s16 + $0x1a0] sm:$0xff]
      %v2135 = vld [vmem:[%s16 + $0x1a8] sm:$0xff]
      %v2136 = vld [vmem:[%s16 + $0x1b0] sm:$0xff]
      %v2137 = vld [vmem:[%s16 + $0x1b8] sm:$0xff]
      %v2138 = vld [vmem:[%s16 + $0x1c0] sm:$0xff]
      %v2139 = vld [vmem:[%s16 + $0x1c8] sm:$0xff]
      %v2140 = vld [vmem:[%s16 + $0x1d0] sm:$0xff]
      %v2141 = vld [vmem:[%s16 + $0x1d8] sm:$0xff]
      %v2142 = vld [vmem:[%s16 + $0x1e0] sm:$0xff]
      %v2143 = vld [vmem:[%s16 + $0x1e8] sm:$0xff]
      %v2144 = vld [vmem:[%s16 + $0x1f0] sm:$0xff]
      %v2145 = vld [vmem:[%s16 + $0x1f8] sm:$0xff]
      %v2146 = vld [vmem:[%s16 + $0x200] sm:$0xff]
      %v2147 = vld [vmem:[%s16 + $0x208] sm:$0xff]
      %v2148 = vld [vmem:[%s16 + $0x210] sm:$0xff]
      %v2149 = vld [vmem:[%s16 + $0x218] sm:$0xff]
      %v2150 = vld [vmem:[%s16 + $0x220] sm:$0xff]
      %v2151 = vld [vmem:[%s16 + $0x228] sm:$0xff]
      %v2152 = vld [vmem:[%s16 + $0x230] sm:$0xff]
      %v2153 = vld [vmem:[%s16 + $0x238] sm:$0xff]
      %v2154 = vld [vmem:[%s16 + $0x240] sm:$0xff]
      %v2155 = vld [vmem:[%s16 + $0x248] sm:$0xff]
      %v2156 = vld [vmem:[%s16 + $0x250] sm:$0xff]
      %v2157 = vld [vmem:[%s16 + $0x258] sm:$0xff]
      %v2158 = vld [vmem:[%s16 + $0x260] sm:$0xff]
      %v2159 = vld [vmem:[%s16 + $0x268] sm:$0xff]
      %vm2160 = vcmask 457728
      %v2161 = vsel %vm2160, %v2075, 0
      %2163 = vmatprep.subr.mxu0 %v2083
      %2164 = vmatpush1.msra.mxu0 %v2082
      %2165 = vmatprep.subr.mxu0 %v2085
      %2166 = vmatpush1.msra.mxu0 %v2084
      %2167 = vmatprep.subr.mxu0 %v2087
      %2168 = vmatpush1.msra.mxu0 %v2086
      %2169 = vmatprep.subr.mxu0 %v2089
      %2170 = vmatpush1.msra.mxu0 %v2088
      %2171 = vmatprep.subr.mxu0 %v2091
      %2172 = vmatpush1.msra.mxu0 %v2090
      %2173 = vmatprep.subr.mxu0 %v2093
      %2174 = vmatpush1.msra.mxu0 %v2092
      %2175 = vmatprep.subr.mxu0 %v2095
      %2176 = vmatpush1.msra.mxu0 %v2094
      %2177 = vmatprep.subr.mxu0 %v2097
      %2178 = vmatpush1.msra.mxu0 %v2096
      %2179 = vmatprep.subr.mxu0 %v2099
      %2180 = vmatpush1.msra.mxu0 %v2098
      %2181 = vmatprep.subr.mxu0 %v2101
      %2182 = vmatpush1.msra.mxu0 %v2100
      %2183 = vmatprep.subr.mxu0 %v2103
      %2184 = vmatpush1.msra.mxu0 %v2102
      %2185 = vmatprep.subr.mxu0 %v2105
      %2186 = vmatpush1.msra.mxu0 %v2104
      %2187 = vmatprep.subr.mxu0 %v2107
      %2188 = vmatpush1.msra.mxu0 %v2106
      %2189 = vmatprep.subr.mxu0 %v2109
      %2190 = vmatpush1.msra.mxu0 %v2108
      %2191 = vmatprep.subr.mxu0 %v2111
      %2192 = vmatpush1.msra.mxu0 %v2110
      %2193 = vmatprep.subr.mxu0 %v2113
      %2194 = vmatpush1.msra.mxu0 %v2112
      %2195 = vmatprep.subr.mxu0 %v2115
      %2196 = vmatpush1.msra.mxu0 %v2114
      %2197 = vmatprep.subr.mxu0 %v2117
      %2198 = vmatpush1.msra.mxu0 %v2116
      %2199 = vmatprep.subr.mxu0 %v2119
      %2200 = vmatpush1.msra.mxu0 %v2118
      %2201 = vmatprep.subr.mxu0 %v2121
      %2202 = vmatpush1.msra.mxu0 %v2120
      %2203 = vmatprep.subr.mxu0 %v2123
      %2204 = vmatpush1.msra.mxu0 %v2122
      %2205 = vmatprep.subr.mxu0 %v2125
      %2206 = vmatpush1.msra.mxu0 %v2124
      %2207 = vmatprep.subr.mxu0 %v2127
      %2208 = vmatpush1.msra.mxu0 %v2126
      %2209 = vmatprep.subr.mxu0 %v2129
      %2210 = vmatpush1.msra.mxu0 %v2128
      %2211 = vmatprep.subr.mxu0 %v2131
      %2212 = vmatpush1.msra.mxu0 %v2130
      %2213 = vmatprep.subr.mxu0 %v2133
      %2214 = vmatpush1.msra.mxu0 %v2132
      %2215 = vmatprep.subr.mxu0 %v2135
      %2216 = vmatpush1.msra.mxu0 %v2134
      %2217 = vmatprep.subr.mxu0 %v2137
      %2218 = vmatpush1.msra.mxu0 %v2136
      %2219 = vmatprep.subr.mxu0 %v2139
      %2220 = vmatpush1.msra.mxu0 %v2138
      %2221 = vmatprep.subr.mxu0 %v2141
      %2222 = vmatpush1.msra.mxu0 %v2140
      %2223 = vmatprep.subr.mxu0 %v2143
      %2224 = vmatpush1.msra.mxu0 %v2142
      %2225 = vmatprep.subr.mxu0 %v2145
      %2226 = vmatpush1.msra.mxu0 %v2144
      %2227 = vmatprep.mubr.f32.mxu0 %v2081
      %2228 = vmatmul.mubr.f32.gmra.mrb[0].mxu0 %v2077
      %v2229 = vpop.f32.mrb[0].mxu0
      %v2230 = vadd.f32 0.0, %v2229
      %v2231 = vpop.f32.mrb[0].mxu0
      %v2232 = vadd.f32 0.0, %v2231
      %2233 = vdwg.mxu0
      %2234 = vmatprep.subr.mxu0 %v2147
      %2235 = vmatpush1.msra.mxu0 %v2146
      %2236 = vmatprep.subr.mxu0 %v2149
      %2237 = vmatpush1.msra.mxu0 %v2148
      %2238 = vmatprep.subr.mxu0 %v2151
      %2239 = vmatpush1.msra.mxu0 %v2150
      %2240 = vmatprep.subr.mxu0 %v2153
      %2241 = vmatpush1.msra.mxu0 %v2152
      %2242 = vmatprep.subr.mxu0 %v2155
      %2243 = vmatpush1.msra.mxu0 %v2154
      %2244 = vmatprep.subr.mxu0 %v2157
      %2245 = vmatpush1.msra.mxu0 %v2156
      %2246 = vmatprep.subr.mxu0 %v2159
      %2247 = vmatpush1.msra.mxu0 %v2158
      %2248 = vmatprep.subr.mxu0 0.0
      %2249 = vmatpush1.msra.mxu0 0.0
      %2250 = vmatprep.subr.mxu0 0.0
      %2251 = vmatpush1.msra.mxu0 0.0
      %2252 = vmatprep.subr.mxu0 0.0
      %2253 = vmatpush1.msra.mxu0 0.0
      %2254 = vmatprep.subr.mxu0 0.0
      %2255 = vmatpush1.msra.mxu0 0.0
      %2256 = vmatprep.subr.mxu0 0.0
      %2257 = vmatpush1.msra.mxu0 0.0
      %2258 = vmatprep.subr.mxu0 0.0
      %2259 = vmatpush1.msra.mxu0 0.0
      %2260 = vmatprep.subr.mxu0 0.0
      %2261 = vmatpush1.msra.mxu0 0.0
      %2262 = vmatprep.subr.mxu0 0.0
      %2263 = vmatpush1.msra.mxu0 0.0
      %2264 = vmatprep.subr.mxu0 0.0
      %2265 = vmatpush1.msra.mxu0 0.0
      %2266 = vmatprep.subr.mxu0 0.0
      %2267 = vmatpush1.msra.mxu0 0.0
      %2268 = vmatprep.subr.mxu0 0.0
      %2269 = vmatpush1.msra.mxu0 0.0
      %2270 = vmatprep.subr.mxu0 0.0
      %2271 = vmatpush1.msra.mxu0 0.0
      %2272 = vmatprep.subr.mxu0 0.0
      %2273 = vmatpush1.msra.mxu0 0.0
      %2274 = vmatprep.subr.mxu0 0.0
      %2275 = vmatpush1.msra.mxu0 0.0
      %2276 = vmatprep.subr.mxu0 0.0
      %2277 = vmatpush1.msra.mxu0 0.0
      %2278 = vmatprep.subr.mxu0 0.0
      %2279 = vmatpush1.msra.mxu0 0.0
      %2280 = vmatprep.subr.mxu0 0.0
      %2281 = vmatpush1.msra.mxu0 0.0
      %2282 = vmatprep.subr.mxu0 0.0
      %2283 = vmatpush1.msra.mxu0 0.0
      %2284 = vmatprep.subr.mxu0 0.0
      %2285 = vmatpush1.msra.mxu0 0.0
      %2286 = vmatprep.subr.mxu0 0.0
      %2287 = vmatpush1.msra.mxu0 0.0
      %2288 = vmatprep.subr.mxu0 0.0
      %2289 = vmatpush1.msra.mxu0 0.0
      %2290 = vmatprep.subr.mxu0 0.0
      %2291 = vmatpush1.msra.mxu0 0.0
      %2292 = vmatprep.subr.mxu0 0.0
      %2293 = vmatpush1.msra.mxu0 0.0
      %2294 = vmatprep.subr.mxu0 0.0
      %2295 = vmatpush1.msra.mxu0 0.0
      %2296 = vmatprep.subr.mxu0 0.0
      %2297 = vmatpush1.msra.mxu0 0.0
      %2298 = vmatprep.mubr.f32.mxu0 0.0
      %2299 = vmatmul.mubr.f32.gmra.mrb[0].mxu0 %v2161
      %v2300 = vpop.f32.mrb[0].mxu0
      %v2301 = vadd.f32 %v2230, %v2300
      %v2302 = vpop.f32.mrb[0].mxu0
      %v2303 = vadd.f32 %v2232, %v2302
      %2304 = vdwg.mxu0
      %v2307 = vcombine.low %v2301, %v2303
      %2309 = vst [vmem:[%s653] sm:$0xff] %v2307
      %p2310 = scmp.lt.s32.totalorder %s31, 1
      %s2311 = scalar_select %p2310, %s31, 1
      %s2312 = smul.addr %s2311, 2
      %s2313 = smul.addr %s2312, 4
      %s2314 = scalar_lea.vmem %s17, %s2313
      %p2315 = scmp.lt.s32.totalorder %s31, 1
      %s2316 = scalar_select %p2315, %s31, 1
      %s2317 = smul.addr %s2316, 8
      %s2318 = scalar_lea.vmem %s18, %s2317
      %p2319 = scmp.lt.s32.totalorder %s31, 1
      %s2320 = scalar_select %p2319, %s31, 1
      %s2321 = smul.addr %s2320, 2
      %s2322 = smul.addr %s2321, 8
      %s2323 = scalar_lea.vmem %s19, %s2322
      // Predicated region
      $region89: #{hourglass_2_forward.1} parent=87 // pred_check
        %p2324 = pneg %p421
      $region90: #{hourglass_2_forward.1} parent=87 // pred_check_branch
        %2326 = sbr.rel (%p2324) target = $region92
      $region91: #{hourglass_2_forward.1} parent=87 // pred_region
        _
      $region92: #{hourglass_2_forward.1} parent=87 // pred_fallthru
        _
      // Predicated region
      $region93: #{hourglass_2_forward.1} parent=87 // pred_check
        %p2327 = pneg %p447
      $region94: #{hourglass_2_forward.1} parent=87 // pred_check_branch
        %2329 = sbr.rel (%p2327) target = $region96
      $region95: #{hourglass_2_forward.1} parent=87 // pred_region
        _
      $region96: #{hourglass_2_forward.1} parent=87 // pred_fallthru
        _
      // Predicated region
      $region97: #{hourglass_2_forward.1} parent=87 // pred_check
        %p2330 = pneg %p473
      $region98: #{hourglass_2_forward.1} parent=87 // pred_check_branch
        %2332 = sbr.rel (%p2330) target = $region100
      $region99: #{hourglass_2_forward.1} parent=87 // pred_region
        _
      $region100: #{hourglass_2_forward.1} parent=87 // pred_fallthru
        _
    $region88: #{hourglass_2_forward.1} parent=5 // pred_fallthru
      _
    %p2333 = scmp.le.s32.totalorder 2, %s26
    // Predicated region
    $region101: #{hourglass_2_forward.1} parent=5 // pred_check
      %p2334 = pneg %p2333
    $region102: #{hourglass_2_forward.1} parent=5 // pred_check_branch
      %2336 = sbr.rel (%p2334) target = $region104
    $region103: #{hourglass_2_forward.1} parent=5 // pred_region
      %s2337 = ssub.s32 %s26, 2
      // Predicated region
      $region105: #{hourglass_2_forward.1} parent=103 // pred_check
        %p2338 = pneg %p427
      $region106: #{hourglass_2_forward.1} parent=103 // pred_check_branch
        %2340 = sbr.rel (%p2338) target = $region108
      $region107: #{hourglass_2_forward.1} parent=103 // pred_region
        %p2341 = scmp.lt.s32.totalorder %s32, 1
        %s2342 = scalar_select %p2341, %s32, 1
        %s2343 = smul.addr %s2342, 2
        %s2344 = smul.addr %s2343, 4
        %s2345 = scalar_lea.vmem %s17, %s2344
      $region108: #{hourglass_2_forward.1} parent=103 // pred_fallthru
        _
      // Predicated region
      $region109: #{hourglass_2_forward.1} parent=103 // pred_check
        %p2346 = pneg %p453
      $region110: #{hourglass_2_forward.1} parent=103 // pred_check_branch
        %2348 = sbr.rel (%p2346) target = $region112
      $region111: #{hourglass_2_forward.1} parent=103 // pred_region
        %p2349 = scmp.lt.s32.totalorder %s32, 1
        %s2350 = scalar_select %p2349, %s32, 1
        %s2351 = smul.addr %s2350, 8
        %s2352 = scalar_lea.vmem %s18, %s2351
      $region112: #{hourglass_2_forward.1} parent=103 // pred_fallthru
        _
      // Predicated region
      $region113: #{hourglass_2_forward.1} parent=103 // pred_check
        %p2353 = pneg %p479
      $region114: #{hourglass_2_forward.1} parent=103 // pred_check_branch
        %2355 = sbr.rel (%p2353) target = $region116
      $region115: #{hourglass_2_forward.1} parent=103 // pred_region
        %p2356 = scmp.lt.s32.totalorder %s32, 1
        %s2357 = scalar_select %p2356, %s32, 1
        %s2358 = smul.addr %s2357, 2
        %s2359 = smul.addr %s2358, 8
        %s2360 = scalar_lea.vmem %s19, %s2359
      $region116: #{hourglass_2_forward.1} parent=103 // pred_fallthru
        _
    $region104: #{hourglass_2_forward.1} parent=5 // pred_fallthru
      _
  $region6: #{hourglass_2_forward.1} parent=0 // loop_footer
    %s30 = sadd.s32 1, %s26
  $region7: #{hourglass_2_forward.1} parent=0 // loop_footer_branch
    %25 = sbr.rel target = $region3
  $region8: #{hourglass_2_forward.1} parent=0 // loop_exit
    _

</llo_original>
